<compile_context>
chip_gen: v7x
topology: tpu7x:2x2x1
jax: 0.10.0
libtpu: 0.0.40
codegen_flags: <defaults>
</compile_context>

<pallas_src>
import jax
import jax.numpy as jnp
from jax.experimental import pallas as pl
from jax.experimental.pallas import tpu as pltpu

# ---------------------------------------------------------------------------
# Model dimensions (small, consistent with the module's forward)
# ---------------------------------------------------------------------------
B = 2          # batch
T = 8          # time
D = 32         # hidden size (in_size == size)
H = 4          # attention heads
DK = D // H    # per-head dim
F = 64         # feed-forward hidden size
EPS = 1e-12    # ESPnet LayerNorm eps


# ---------------------------------------------------------------------------
# Pallas kernel: one batch element per program (grid=(B,), "parallel")
# ---------------------------------------------------------------------------
def encoder_layer_kernel(x_ref, mask_ref, vec_ref, wa_ref, w2_ref, o_ref):
    t = x_ref.shape[1]
    d = x_ref.shape[2]
    f = w2_ref.shape[0]
    dk = d // H

    x = x_ref[0]            # (T, D)  this batch element's activations
    mrow = mask_ref[0]      # (1, T)  1.0 = valid key, 0.0 = padding
    vec = vec_ref[...]      # (4, 96) packed bias rows
    wa = wa_ref[...]        # (D, 3D + D + F) = [wqkv | wo | w1]   (LN/scale folded in)
    w2 = w2_ref[...]        # (F, D)

    # --- unpack parameter slabs with static slices (no extra DMAs) ---
    bqkv = vec[0:1, :3 * d]     # QKV bias (LN1 beta + 1/sqrt(dk) folded in)
    bo = vec[1:2, :d]
    bf1 = vec[2:3, :f]          # FFN bias (LN2 beta folded in)
    bf2 = vec[3:4, :d]

    wqkv = wa[:, :3 * d]        # (D, 3D)
    wo = wa[:, 3 * d:4 * d]     # (D, D)
    w1 = wa[:, 4 * d:4 * d + f] # (D, F)

    def center_norm(v):
        # LayerNorm affine (gamma/beta) is folded into the following matmul,
        # so only centering + rsqrt remains.
        mu = jnp.mean(v, axis=-1, keepdims=True)
        c = v - mu
        var = jnp.mean(c * c, axis=-1, keepdims=True)
        return c * jax.lax.rsqrt(var + EPS)

    # Additive key mask built in-kernel: 0 where attendable, -1e30 where padded.
    add_mask = (mrow - 1.0) * 1e30          # (1, T), broadcasts over query rows

    # ---------------- self-attention block (pre-norm) ----------------
    xn = center_norm(x)                                                   # (T, D)
    # Fused QKV projection: one MXU pass, 96-lane output (scale + LN1 affine folded).
    qkv = jnp.dot(xn, wqkv, preferred_element_type=jnp.float32) + bqkv    # (T, 3D)

    ctx_heads = []
    for h in range(H):                      # static unroll, H = 4
        q_h = qkv[:, h * dk:(h + 1) * dk]                   # (T, DK) pre-scaled
        k_h = qkv[:, d + h * dk:d + (h + 1) * dk]           # (T, DK)
        v_h = qkv[:, 2 * d + h * dk:2 * d + (h + 1) * dk]   # (T, DK)

        s = jax.lax.dot_general(q_h, k_h, (((1,), (1,)), ((), ())),
                                preferred_element_type=jnp.float32)       # (T, T)
        s = s + add_mask
        m = jnp.max(s, axis=-1, keepdims=True)
        p = jnp.exp(s - m) * mrow           # post-softmax zeroing (matches masked_fill(0))
        denom = jnp.sum(p, axis=-1, keepdims=True)
        attn = p * pl.reciprocal(jnp.maximum(denom, 1e-30), approx=True)
        ctx_heads.append(jnp.dot(attn, v_h, preferred_element_type=jnp.float32))

    ctx = jnp.concatenate(ctx_heads, axis=-1)                             # (T, D)
    x2 = x + jnp.dot(ctx, wo, preferred_element_type=jnp.float32) + bo    # dropout: eval no-op

    # ---------------- feed-forward block (pre-norm) ----------------
    xn2 = center_norm(x2)
    hdn = jnp.maximum(jnp.dot(xn2, w1, preferred_element_type=jnp.float32) + bf1, 0.0)
    ff = jnp.dot(hdn, w2, preferred_element_type=jnp.float32) + bf2
    o_ref[0] = (x2 + ff).astype(o_ref.dtype)


# ---------------------------------------------------------------------------
# One-time parameter packing (hoisted out of the per-call path)
# ---------------------------------------------------------------------------
def pack_params(p):
    """Fold LN affines + 1/sqrt(dk) into the weights and pack into 3 slabs."""
    hi = jax.lax.Precision.HIGHEST
    d = p["wq"].shape[0]
    f = p["w1"].shape[1]
    dk = d // H
    scale = 1.0 / (dk ** 0.5)

    g1 = p["g1"].reshape(1, d)
    be1 = p["be1"].reshape(1, d)
    g2 = p["g2"].reshape(1, d)
    be2 = p["be2"].reshape(1, d)

    # Fold LN1 affine into the QKV projection; fold 1/sqrt(dk) into the Q part.
    wq = (g1.T * p["wq"]) * scale
    wk = g1.T * p["wk"]
    wv = g1.T * p["wv"]
    bq = (jnp.dot(be1, p["wq"], precision=hi) + p["bq"].reshape(1, d)) * scale
    bk = jnp.dot(be1, p["wk"], precision=hi) + p["bk"].reshape(1, d)
    bv = jnp.dot(be1, p["wv"], precision=hi) + p["bv"].reshape(1, d)
    wqkv = jnp.concatenate([wq, wk, wv], axis=1)          # (D, 3D)
    bqkv = jnp.concatenate([bq, bk, bv], axis=1)          # (1, 3D)

    # Fold LN2 affine into the first FFN layer.
    w1 = g2.T * p["w1"]                                   # (D, F)
    bf1 = jnp.dot(be2, p["w1"], precision=hi) + p["bf1"].reshape(1, f)

    wa = jnp.concatenate([wqkv, p["wo"], w1], axis=1)     # (D, 3D + D + F)

    vw = max(3 * d, f)                                    # 96 for this config
    def row(v):
        v2 = v.reshape(1, -1).astype(jnp.float32)
        return jnp.pad(v2, ((0, 0), (0, vw - v2.shape[1])))

    vec = jnp.concatenate(
        [row(bqkv), row(p["bo"]), row(bf1), row(p["bf2"])], axis=0)   # (4, vw)

    return {
        "vec": jnp.asarray(vec, jnp.float32),
        "wa": jnp.asarray(wa, jnp.float32),
        "w2": jnp.asarray(p["w2"], jnp.float32),
    }


# ---------------------------------------------------------------------------
# Per-call wrapper: single pallas_call with a parallel batch grid
# ---------------------------------------------------------------------------
def encoder_layer(x, mask, packed):
    """x: (B, T, D) float32, mask: (B, T) float32 (1=valid). Returns (B, T, D)."""
    b, t, d = x.shape
    vec, wa, w2 = packed["vec"], packed["wa"], packed["w2"]
    mask3 = mask.astype(jnp.float32).reshape(b, 1, t)     # (B, 1, T), tiny

    return pl.pallas_call(
        encoder_layer_kernel,
        out_shape=jax.ShapeDtypeStruct((b, t, d), x.dtype),
        grid=(b,),
        in_specs=[
            pl.BlockSpec((1, t, d), lambda i: (i, 0, 0)),       # this batch's activations
            pl.BlockSpec((1, 1, t), lambda i: (i, 0, 0)),       # this batch's key mask
            pl.BlockSpec(vec.shape, lambda i: (0, 0)),          # bias slab (invariant)
            pl.BlockSpec(wa.shape, lambda i: (0, 0)),           # weight slab (invariant)
            pl.BlockSpec(w2.shape, lambda i: (0, 0)),           # FFN second weight
        ],
        out_specs=pl.BlockSpec((1, t, d), lambda i: (i, 0, 0)),
        compiler_params=pltpu.CompilerParams(dimension_semantics=("parallel",)),
    )(x, mask3, vec, wa, w2)


# ---------------------------------------------------------------------------
# Pure-JAX reference (original unfused math) for a correctness check
# ---------------------------------------------------------------------------
def reference_forward(x, mask, p):
    hi = jax.lax.Precision.HIGHEST

    def ln(v, g, b):
        mu = jnp.mean(v, axis=-1, keepdims=True)
        var = jnp.mean((v - mu) ** 2, axis=-1, keepdims=True)
        return (v - mu) * jax.lax.rsqrt(var + EPS) * g + b

    residual = x
    xn = ln(x, p["g1"], p["be1"])
    q = jnp.einsum("btd,de->bte", xn, p["wq"], precision=hi) + p["bq"]
    k = jnp.einsum("btd,de->bte", xn, p["wk"], precision=hi) + p["bk"]
    v = jnp.einsum("btd,de->bte", xn, p["wv"], precision=hi) + p["bv"]
    qh = q.reshape(B, T, H, DK)
    kh = k.reshape(B, T, H, DK)
    vh = v.reshape(B, T, H, DK)
    scores = jnp.einsum("bthd,bshd->bhts", qh, kh, precision=hi) / (DK ** 0.5)
    mb = mask.reshape(B, 1, 1, T)
    scores = jnp.where(mb > 0, scores, -1e30)
    attn = jax.nn.softmax(scores, axis=-1)
    attn = jnp.where(mb > 0, attn, 0.0)
    ctx = jnp.einsum("bhts,bshd->bthd", attn, vh, precision=hi).reshape(B, T, D)
    attn_out = jnp.einsum("btd,de->bte", ctx, p["wo"], precision=hi) + p["bo"]
    x = residual + attn_out

    residual = x
    xn2 = ln(x, p["g2"], p["be2"])
    h = jax.nn.relu(jnp.einsum("btd,df->btf", xn2, p["w1"], precision=hi) + p["bf1"])
    ff = jnp.einsum("btf,fd->btd", h, p["w2"], precision=hi) + p["bf2"]
    return residual + ff


# ---------------------------------------------------------------------------
# Deterministic parameter init + run
# ---------------------------------------------------------------------------
def make_params(key):
    ks = jax.random.split(key, 12)
    s = 0.1
    params = {
        # non-trivial LN affines so the pack-time folds are actually exercised
        "g1": 1.0 + 0.1 * jax.random.normal(ks[6], (1, D), jnp.float32),
        "be1": 0.05 * jax.random.normal(ks[7], (1, D), jnp.float32),
        "wq": s * jax.random.normal(ks[0], (D, D), jnp.float32),
        "bq": 0.01 * jax.random.normal(ks[8], (1, D), jnp.float32),
        "wk": s * jax.random.normal(ks[1], (D, D), jnp.float32),
        "bk": 0.01 * jax.random.normal(ks[9], (1, D), jnp.float32),
        "wv": s * jax.random.normal(ks[2], (D, D), jnp.float32),
        "bv": 0.01 * jax.random.normal(ks[10], (1, D), jnp.float32),
        "wo": s * jax.random.normal(ks[3], (D, D), jnp.float32),
        "bo": 0.01 * jnp.ones((1, D), jnp.float32),
        "g2": 1.0 + 0.1 * jax.random.normal(ks[11], (1, D), jnp.float32),
        "be2": 0.05 * jnp.ones((1, D), jnp.float32),
        "w1": s * jax.random.normal(ks[4], (D, F), jnp.float32),
        "bf1": 0.01 * jnp.ones((1, F), jnp.float32),
        "w2": s * jax.random.normal(ks[5], (F, D), jnp.float32),
        "bf2": 0.01 * jnp.ones((1, D), jnp.float32),
    }
    return params


if __name__ == "__main__":
    key = jax.random.PRNGKey(0)
    kx, kp = jax.random.split(key)
    x = jax.random.normal(kx, (B, T, D), jnp.float32)
    # last 2 key positions of batch element 1 are padding
    mask = jnp.ones((B, T), jnp.float32).at[1, T - 2:].set(0.0)
    params = make_params(kp)

    # One-time packing (LN/scale folds + slab layout), hoisted out of the call path.
    packed = pack_params(params)
    packed = jax.tree_util.tree_map(jax.block_until_ready, packed)

    out = encoder_layer(x, mask, packed)
    out = jax.block_until_ready(out)

    ref = reference_forward(x, mask, params)
    assert out.shape == (B, T, D)
    assert bool(jnp.all(jnp.isfinite(out)))
    max_diff = float(jnp.max(jnp.abs(out - ref)))
    assert max_diff < 5e-3, f"mismatch vs reference: {max_diff}"

    print("KERNEL_OK")
</pallas_src>

<mosaic_0001>
module attributes {stable_mosaic.version = 11 : i64} {
  func.func @encoder_layer_kernel(%arg0: i32, %arg1: memref<1x8x32xf32, #tpu.memory_space<vmem>>, %arg2: memref<1x1x8xf32, #tpu.memory_space<vmem>>, %arg3: memref<4x96xf32, #tpu.memory_space<vmem>>, %arg4: memref<32x192xf32, #tpu.memory_space<vmem>>, %arg5: memref<64x32xf32, #tpu.memory_space<vmem>>, %arg6: memref<1x8x32xf32, #tpu.memory_space<vmem>>) attributes {dimension_semantics = [#tpu.dimension_semantics<parallel>], iteration_bounds = array<i64: 2>, scalar_prefetch = 0 : i64, scratch_operands = 0 : i64, tpu.core_type = #tpu.core_type<tc>, window_params = [{transform_indices = @transform_0, window_bounds = array<i64: 1, 8, 32>}, {transform_indices = @transform_1, window_bounds = array<i64: 1, 1, 8>}, {pipeline_mode = #tpu.pipeline_mode<synchronous>, transform_indices = @transform_2, window_bounds = array<i64: 4, 96>}, {pipeline_mode = #tpu.pipeline_mode<synchronous>, transform_indices = @transform_3, window_bounds = array<i64: 32, 192>}, {pipeline_mode = #tpu.pipeline_mode<synchronous>, transform_indices = @transform_4, window_bounds = array<i64: 64, 32>}, {transform_indices = @transform_5, window_bounds = array<i64: 1, 8, 32>}]} {
    %c0 = arith.constant 0 : index
    %c0_0 = arith.constant 0 : index
    %c0_1 = arith.constant 0 : index
    %0 = vector.load %arg1[%c0, %c0_0, %c0_1] : memref<1x8x32xf32, #tpu.memory_space<vmem>>, vector<1x8x32xf32>
    %1 = vector.shape_cast %0 : vector<1x8x32xf32> to vector<8x32xf32>
    %c0_2 = arith.constant 0 : index
    %c0_3 = arith.constant 0 : index
    %c0_4 = arith.constant 0 : index
    %2 = vector.load %arg2[%c0_2, %c0_3, %c0_4] : memref<1x1x8xf32, #tpu.memory_space<vmem>>, vector<1x1x8xf32>
    %3 = vector.shape_cast %2 : vector<1x1x8xf32> to vector<1x8xf32>
    %c0_5 = arith.constant 0 : index
    %c0_6 = arith.constant 0 : index
    %4 = vector.load %arg3[%c0_5, %c0_6] : memref<4x96xf32, #tpu.memory_space<vmem>>, vector<4x96xf32>
    %c0_7 = arith.constant 0 : index
    %c0_8 = arith.constant 0 : index
    %5 = vector.load %arg4[%c0_7, %c0_8] : memref<32x192xf32, #tpu.memory_space<vmem>>, vector<32x192xf32>
    %c0_9 = arith.constant 0 : index
    %c0_10 = arith.constant 0 : index
    %6 = vector.load %arg5[%c0_9, %c0_10] : memref<64x32xf32, #tpu.memory_space<vmem>>, vector<64x32xf32>
    %7 = vector.extract_strided_slice %4 {offsets = [0, 0], sizes = [1, 96], strides = [1, 1]} : vector<4x96xf32> to vector<1x96xf32>
    %8 = vector.extract_strided_slice %4 {offsets = [1, 0], sizes = [1, 32], strides = [1, 1]} : vector<4x96xf32> to vector<1x32xf32>
    %9 = vector.extract_strided_slice %4 {offsets = [2, 0], sizes = [1, 64], strides = [1, 1]} : vector<4x96xf32> to vector<1x64xf32>
    %10 = vector.extract_strided_slice %4 {offsets = [3, 0], sizes = [1, 32], strides = [1, 1]} : vector<4x96xf32> to vector<1x32xf32>
    %11 = vector.extract_strided_slice %5 {offsets = [0, 0], sizes = [32, 96], strides = [1, 1]} : vector<32x192xf32> to vector<32x96xf32>
    %12 = vector.extract_strided_slice %5 {offsets = [0, 96], sizes = [32, 32], strides = [1, 1]} : vector<32x192xf32> to vector<32x32xf32>
    %13 = vector.extract_strided_slice %5 {offsets = [0, 128], sizes = [32, 64], strides = [1, 1]} : vector<32x192xf32> to vector<32x64xf32>
    %cst = arith.constant 1.000000e+00 : f32
    %14 = vector.broadcast %cst : f32 to vector<1x8xf32>
    %15 = arith.subf %3, %14 : vector<1x8xf32>
    %cst_11 = arith.constant 1.000000e+30 : f32
    %16 = vector.broadcast %cst_11 : f32 to vector<1x8xf32>
    %17 = arith.mulf %15, %16 : vector<1x8xf32>
    %cst_12 = arith.constant dense<0.000000e+00> : vector<8xf32>
    %18 = vector.multi_reduction <add>, %1, %cst_12 [1] : vector<8x32xf32> to vector<8xf32>
    %19 = vector.shape_cast %18 : vector<8xf32> to vector<8x1xf32>
    %cst_13 = arith.constant 3.200000e+01 : f32
    %20 = vector.broadcast %cst_13 : f32 to vector<8x1xf32>
    %21 = arith.divf %19, %20 : vector<8x1xf32>
    %22 = vector.broadcast %21 : vector<8x1xf32> to vector<8x32xf32>
    %23 = arith.subf %1, %22 : vector<8x32xf32>
    %24 = arith.mulf %23, %23 : vector<8x32xf32>
    %cst_14 = arith.constant dense<0.000000e+00> : vector<8xf32>
    %25 = vector.multi_reduction <add>, %24, %cst_14 [1] : vector<8x32xf32> to vector<8xf32>
    %26 = vector.shape_cast %25 : vector<8xf32> to vector<8x1xf32>
    %cst_15 = arith.constant 3.200000e+01 : f32
    %27 = vector.broadcast %cst_15 : f32 to vector<8x1xf32>
    %28 = arith.divf %26, %27 : vector<8x1xf32>
    %cst_16 = arith.constant 9.99999996E-13 : f32
    %29 = vector.broadcast %cst_16 : f32 to vector<8x1xf32>
    %30 = arith.addf %28, %29 : vector<8x1xf32>
    %31 = math.rsqrt %30 : vector<8x1xf32>
    %32 = vector.broadcast %31 : vector<8x1xf32> to vector<8x32xf32>
    %33 = arith.mulf %23, %32 : vector<8x32xf32>
    %cst_17 = arith.constant dense<0.000000e+00> : vector<8x96xf32>
    %34 = tpu.matmul %33, %11, %cst_17 {dimension_numbers = #tpu.dot_dimension_numbers<[1], [0], [0], [1], [0, 0, 1, 1], [], []>} : vector<8x32xf32>, vector<32x96xf32>, vector<8x96xf32> -> vector<8x96xf32>
    %35 = vector.broadcast %7 : vector<1x96xf32> to vector<8x96xf32>
    %36 = arith.addf %34, %35 : vector<8x96xf32>
    %37 = vector.extract_strided_slice %36 {offsets = [0, 0], sizes = [8, 8], strides = [1, 1]} : vector<8x96xf32> to vector<8x8xf32>
    %38 = vector.extract_strided_slice %36 {offsets = [0, 32], sizes = [8, 8], strides = [1, 1]} : vector<8x96xf32> to vector<8x8xf32>
    %39 = vector.extract_strided_slice %36 {offsets = [0, 64], sizes = [8, 8], strides = [1, 1]} : vector<8x96xf32> to vector<8x8xf32>
    %cst_18 = arith.constant dense<0.000000e+00> : vector<8x8xf32>
    %40 = tpu.matmul %37, %38, %cst_18 {dimension_numbers = #tpu.dot_dimension_numbers<[1], [1], [0], [0], [0, 0, 1, 0], [], []>} : vector<8x8xf32>, vector<8x8xf32>, vector<8x8xf32> -> vector<8x8xf32>
    %41 = vector.broadcast %17 : vector<1x8xf32> to vector<8x8xf32>
    %42 = arith.addf %40, %41 : vector<8x8xf32>
    %cst_19 = arith.constant dense<0xFF800000> : vector<8xf32>
    %43 = vector.multi_reduction <maximumf>, %42, %cst_19 [1] : vector<8x8xf32> to vector<8xf32>
    %44 = vector.shape_cast %43 : vector<8xf32> to vector<8x1xf32>
    %45 = vector.broadcast %44 : vector<8x1xf32> to vector<8x8xf32>
    %46 = arith.subf %42, %45 : vector<8x8xf32>
    %47 = math.exp %46 : vector<8x8xf32>
    %48 = vector.broadcast %3 : vector<1x8xf32> to vector<8x8xf32>
    %49 = arith.mulf %47, %48 : vector<8x8xf32>
    %cst_20 = arith.constant dense<0.000000e+00> : vector<8xf32>
    %50 = vector.multi_reduction <add>, %49, %cst_20 [1] : vector<8x8xf32> to vector<8xf32>
    %51 = vector.shape_cast %50 : vector<8xf32> to vector<8x1xf32>
    %cst_21 = arith.constant 1.000000e-30 : f32
    %52 = vector.broadcast %cst_21 : f32 to vector<8x1xf32>
    %53 = arith.maximumf %51, %52 : vector<8x1xf32>
    %54 = tpu.reciprocal %53 {approx = true} : vector<8x1xf32> -> vector<8x1xf32>
    %55 = vector.broadcast %54 : vector<8x1xf32> to vector<8x8xf32>
    %56 = arith.mulf %49, %55 : vector<8x8xf32>
    %cst_22 = arith.constant dense<0.000000e+00> : vector<8x8xf32>
    %57 = tpu.matmul %56, %39, %cst_22 {dimension_numbers = #tpu.dot_dimension_numbers<[1], [0], [0], [1], [0, 0, 1, 1], [], []>} : vector<8x8xf32>, vector<8x8xf32>, vector<8x8xf32> -> vector<8x8xf32>
    %58 = vector.extract_strided_slice %36 {offsets = [0, 8], sizes = [8, 8], strides = [1, 1]} : vector<8x96xf32> to vector<8x8xf32>
    %59 = vector.extract_strided_slice %36 {offsets = [0, 40], sizes = [8, 8], strides = [1, 1]} : vector<8x96xf32> to vector<8x8xf32>
    %60 = vector.extract_strided_slice %36 {offsets = [0, 72], sizes = [8, 8], strides = [1, 1]} : vector<8x96xf32> to vector<8x8xf32>
    %cst_23 = arith.constant dense<0.000000e+00> : vector<8x8xf32>
    %61 = tpu.matmul %58, %59, %cst_23 {dimension_numbers = #tpu.dot_dimension_numbers<[1], [1], [0], [0], [0, 0, 1, 0], [], []>} : vector<8x8xf32>, vector<8x8xf32>, vector<8x8xf32> -> vector<8x8xf32>
    %62 = vector.broadcast %17 : vector<1x8xf32> to vector<8x8xf32>
    %63 = arith.addf %61, %62 : vector<8x8xf32>
    %cst_24 = arith.constant dense<0xFF800000> : vector<8xf32>
    %64 = vector.multi_reduction <maximumf>, %63, %cst_24 [1] : vector<8x8xf32> to vector<8xf32>
    %65 = vector.shape_cast %64 : vector<8xf32> to vector<8x1xf32>
    %66 = vector.broadcast %65 : vector<8x1xf32> to vector<8x8xf32>
    %67 = arith.subf %63, %66 : vector<8x8xf32>
    %68 = math.exp %67 : vector<8x8xf32>
    %69 = vector.broadcast %3 : vector<1x8xf32> to vector<8x8xf32>
    %70 = arith.mulf %68, %69 : vector<8x8xf32>
    %cst_25 = arith.constant dense<0.000000e+00> : vector<8xf32>
    %71 = vector.multi_reduction <add>, %70, %cst_25 [1] : vector<8x8xf32> to vector<8xf32>
    %72 = vector.shape_cast %71 : vector<8xf32> to vector<8x1xf32>
    %cst_26 = arith.constant 1.000000e-30 : f32
    %73 = vector.broadcast %cst_26 : f32 to vector<8x1xf32>
    %74 = arith.maximumf %72, %73 : vector<8x1xf32>
    %75 = tpu.reciprocal %74 {approx = true} : vector<8x1xf32> -> vector<8x1xf32>
    %76 = vector.broadcast %75 : vector<8x1xf32> to vector<8x8xf32>
    %77 = arith.mulf %70, %76 : vector<8x8xf32>
    %cst_27 = arith.constant dense<0.000000e+00> : vector<8x8xf32>
    %78 = tpu.matmul %77, %60, %cst_27 {dimension_numbers = #tpu.dot_dimension_numbers<[1], [0], [0], [1], [0, 0, 1, 1], [], []>} : vector<8x8xf32>, vector<8x8xf32>, vector<8x8xf32> -> vector<8x8xf32>
    %79 = vector.extract_strided_slice %36 {offsets = [0, 16], sizes = [8, 8], strides = [1, 1]} : vector<8x96xf32> to vector<8x8xf32>
    %80 = vector.extract_strided_slice %36 {offsets = [0, 48], sizes = [8, 8], strides = [1, 1]} : vector<8x96xf32> to vector<8x8xf32>
    %81 = vector.extract_strided_slice %36 {offsets = [0, 80], sizes = [8, 8], strides = [1, 1]} : vector<8x96xf32> to vector<8x8xf32>
    %cst_28 = arith.constant dense<0.000000e+00> : vector<8x8xf32>
    %82 = tpu.matmul %79, %80, %cst_28 {dimension_numbers = #tpu.dot_dimension_numbers<[1], [1], [0], [0], [0, 0, 1, 0], [], []>} : vector<8x8xf32>, vector<8x8xf32>, vector<8x8xf32> -> vector<8x8xf32>
    %83 = vector.broadcast %17 : vector<1x8xf32> to vector<8x8xf32>
    %84 = arith.addf %82, %83 : vector<8x8xf32>
    %cst_29 = arith.constant dense<0xFF800000> : vector<8xf32>
    %85 = vector.multi_reduction <maximumf>, %84, %cst_29 [1] : vector<8x8xf32> to vector<8xf32>
    %86 = vector.shape_cast %85 : vector<8xf32> to vector<8x1xf32>
    %87 = vector.broadcast %86 : vector<8x1xf32> to vector<8x8xf32>
    %88 = arith.subf %84, %87 : vector<8x8xf32>
    %89 = math.exp %88 : vector<8x8xf32>
    %90 = vector.broadcast %3 : vector<1x8xf32> to vector<8x8xf32>
    %91 = arith.mulf %89, %90 : vector<8x8xf32>
    %cst_30 = arith.constant dense<0.000000e+00> : vector<8xf32>
    %92 = vector.multi_reduction <add>, %91, %cst_30 [1] : vector<8x8xf32> to vector<8xf32>
    %93 = vector.shape_cast %92 : vector<8xf32> to vector<8x1xf32>
    %cst_31 = arith.constant 1.000000e-30 : f32
    %94 = vector.broadcast %cst_31 : f32 to vector<8x1xf32>
    %95 = arith.maximumf %93, %94 : vector<8x1xf32>
    %96 = tpu.reciprocal %95 {approx = true} : vector<8x1xf32> -> vector<8x1xf32>
    %97 = vector.broadcast %96 : vector<8x1xf32> to vector<8x8xf32>
    %98 = arith.mulf %91, %97 : vector<8x8xf32>
    %cst_32 = arith.constant dense<0.000000e+00> : vector<8x8xf32>
    %99 = tpu.matmul %98, %81, %cst_32 {dimension_numbers = #tpu.dot_dimension_numbers<[1], [0], [0], [1], [0, 0, 1, 1], [], []>} : vector<8x8xf32>, vector<8x8xf32>, vector<8x8xf32> -> vector<8x8xf32>
    %100 = vector.extract_strided_slice %36 {offsets = [0, 24], sizes = [8, 8], strides = [1, 1]} : vector<8x96xf32> to vector<8x8xf32>
    %101 = vector.extract_strided_slice %36 {offsets = [0, 56], sizes = [8, 8], strides = [1, 1]} : vector<8x96xf32> to vector<8x8xf32>
    %102 = vector.extract_strided_slice %36 {offsets = [0, 88], sizes = [8, 8], strides = [1, 1]} : vector<8x96xf32> to vector<8x8xf32>
    %cst_33 = arith.constant dense<0.000000e+00> : vector<8x8xf32>
    %103 = tpu.matmul %100, %101, %cst_33 {dimension_numbers = #tpu.dot_dimension_numbers<[1], [1], [0], [0], [0, 0, 1, 0], [], []>} : vector<8x8xf32>, vector<8x8xf32>, vector<8x8xf32> -> vector<8x8xf32>
    %104 = vector.broadcast %17 : vector<1x8xf32> to vector<8x8xf32>
    %105 = arith.addf %103, %104 : vector<8x8xf32>
    %cst_34 = arith.constant dense<0xFF800000> : vector<8xf32>
    %106 = vector.multi_reduction <maximumf>, %105, %cst_34 [1] : vector<8x8xf32> to vector<8xf32>
    %107 = vector.shape_cast %106 : vector<8xf32> to vector<8x1xf32>
    %108 = vector.broadcast %107 : vector<8x1xf32> to vector<8x8xf32>
    %109 = arith.subf %105, %108 : vector<8x8xf32>
    %110 = math.exp %109 : vector<8x8xf32>
    %111 = vector.broadcast %3 : vector<1x8xf32> to vector<8x8xf32>
    %112 = arith.mulf %110, %111 : vector<8x8xf32>
    %cst_35 = arith.constant dense<0.000000e+00> : vector<8xf32>
    %113 = vector.multi_reduction <add>, %112, %cst_35 [1] : vector<8x8xf32> to vector<8xf32>
    %114 = vector.shape_cast %113 : vector<8xf32> to vector<8x1xf32>
    %cst_36 = arith.constant 1.000000e-30 : f32
    %115 = vector.broadcast %cst_36 : f32 to vector<8x1xf32>
    %116 = arith.maximumf %114, %115 : vector<8x1xf32>
    %117 = tpu.reciprocal %116 {approx = true} : vector<8x1xf32> -> vector<8x1xf32>
    %118 = vector.broadcast %117 : vector<8x1xf32> to vector<8x8xf32>
    %119 = arith.mulf %112, %118 : vector<8x8xf32>
    %cst_37 = arith.constant dense<0.000000e+00> : vector<8x8xf32>
    %120 = tpu.matmul %119, %102, %cst_37 {dimension_numbers = #tpu.dot_dimension_numbers<[1], [0], [0], [1], [0, 0, 1, 1], [], []>} : vector<8x8xf32>, vector<8x8xf32>, vector<8x8xf32> -> vector<8x8xf32>
    %121 = tpu.concatenate %57, %78, %99, %120 in 1 : vector<8x8xf32>, vector<8x8xf32>, vector<8x8xf32>, vector<8x8xf32> -> vector<8x32xf32>
    %cst_38 = arith.constant dense<0.000000e+00> : vector<8x32xf32>
    %122 = tpu.matmul %121, %12, %cst_38 {dimension_numbers = #tpu.dot_dimension_numbers<[1], [0], [0], [1], [0, 0, 1, 1], [], []>} : vector<8x32xf32>, vector<32x32xf32>, vector<8x32xf32> -> vector<8x32xf32>
    %123 = arith.addf %1, %122 : vector<8x32xf32>
    %124 = vector.broadcast %8 : vector<1x32xf32> to vector<8x32xf32>
    %125 = arith.addf %123, %124 : vector<8x32xf32>
    %cst_39 = arith.constant dense<0.000000e+00> : vector<8xf32>
    %126 = vector.multi_reduction <add>, %125, %cst_39 [1] : vector<8x32xf32> to vector<8xf32>
    %127 = vector.shape_cast %126 : vector<8xf32> to vector<8x1xf32>
    %cst_40 = arith.constant 3.200000e+01 : f32
    %128 = vector.broadcast %cst_40 : f32 to vector<8x1xf32>
    %129 = arith.divf %127, %128 : vector<8x1xf32>
    %130 = vector.broadcast %129 : vector<8x1xf32> to vector<8x32xf32>
    %131 = arith.subf %125, %130 : vector<8x32xf32>
    %132 = arith.mulf %131, %131 : vector<8x32xf32>
    %cst_41 = arith.constant dense<0.000000e+00> : vector<8xf32>
    %133 = vector.multi_reduction <add>, %132, %cst_41 [1] : vector<8x32xf32> to vector<8xf32>
    %134 = vector.shape_cast %133 : vector<8xf32> to vector<8x1xf32>
    %cst_42 = arith.constant 3.200000e+01 : f32
    %135 = vector.broadcast %cst_42 : f32 to vector<8x1xf32>
    %136 = arith.divf %134, %135 : vector<8x1xf32>
    %cst_43 = arith.constant 9.99999996E-13 : f32
    %137 = vector.broadcast %cst_43 : f32 to vector<8x1xf32>
    %138 = arith.addf %136, %137 : vector<8x1xf32>
    %139 = math.rsqrt %138 : vector<8x1xf32>
    %140 = vector.broadcast %139 : vector<8x1xf32> to vector<8x32xf32>
    %141 = arith.mulf %131, %140 : vector<8x32xf32>
    %cst_44 = arith.constant dense<0.000000e+00> : vector<8x64xf32>
    %142 = tpu.matmul %141, %13, %cst_44 {dimension_numbers = #tpu.dot_dimension_numbers<[1], [0], [0], [1], [0, 0, 1, 1], [], []>} : vector<8x32xf32>, vector<32x64xf32>, vector<8x64xf32> -> vector<8x64xf32>
    %143 = vector.broadcast %9 : vector<1x64xf32> to vector<8x64xf32>
    %144 = arith.addf %142, %143 : vector<8x64xf32>
    %cst_45 = arith.constant 0.000000e+00 : f32
    %145 = vector.broadcast %cst_45 : f32 to vector<8x64xf32>
    %146 = arith.maximumf %144, %145 : vector<8x64xf32>
    %cst_46 = arith.constant dense<0.000000e+00> : vector<8x32xf32>
    %147 = tpu.matmul %146, %6, %cst_46 {dimension_numbers = #tpu.dot_dimension_numbers<[1], [0], [0], [1], [0, 0, 1, 1], [], []>} : vector<8x64xf32>, vector<64x32xf32>, vector<8x32xf32> -> vector<8x32xf32>
    %148 = vector.broadcast %10 : vector<1x32xf32> to vector<8x32xf32>
    %149 = arith.addf %147, %148 : vector<8x32xf32>
    %150 = arith.addf %125, %149 : vector<8x32xf32>
    %c0_47 = arith.constant 0 : index
    %c0_48 = arith.constant 0 : index
    %c0_49 = arith.constant 0 : index
    %151 = vector.load %arg6[%c0_47, %c0_48, %c0_49] : memref<1x8x32xf32, #tpu.memory_space<vmem>>, vector<1x8x32xf32>
    %152 = vector.shape_cast %151 : vector<1x8x32xf32> to vector<8x32xf32>
    %153 = vector.shape_cast %150 : vector<8x32xf32> to vector<1x8x32xf32>
    tpu.vector_store %arg6[%c0_47, %c0_48, %c0_49], %153 {strides = array<i32>} : memref<1x8x32xf32, #tpu.memory_space<vmem>>, vector<1x8x32xf32>,
    return
  }
  func.func @transform_0(%arg0: i32) -> (i32, i32, i32) {
    %c0_i32 = arith.constant 0 : i32
    %c0_i32_0 = arith.constant 0 : i32
    %c0_i32_1 = arith.constant 0 : i32
    return %arg0, %c0_i32, %c0_i32_0 : i32, i32, i32
  }
  func.func @transform_1(%arg0: i32) -> (i32, i32, i32) {
    %c0_i32 = arith.constant 0 : i32
    %c0_i32_0 = arith.constant 0 : i32
    %c0_i32_1 = arith.constant 0 : i32
    return %arg0, %c0_i32, %c0_i32_0 : i32, i32, i32
  }
  func.func @transform_2(%arg0: i32) -> (i32, i32) {
    %c0_i32 = arith.constant 0 : i32
    %c0_i32_0 = arith.constant 0 : i32
    %c0_i32_1 = arith.constant 0 : i32
    return %c0_i32, %c0_i32_0 : i32, i32
  }
  func.func @transform_3(%arg0: i32) -> (i32, i32) {
    %c0_i32 = arith.constant 0 : i32
    %c0_i32_0 = arith.constant 0 : i32
    %c0_i32_1 = arith.constant 0 : i32
    return %c0_i32, %c0_i32_0 : i32, i32
  }
  func.func @transform_4(%arg0: i32) -> (i32, i32) {
    %c0_i32 = arith.constant 0 : i32
    %c0_i32_0 = arith.constant 0 : i32
    %c0_i32_1 = arith.constant 0 : i32
    return %c0_i32, %c0_i32_0 : i32, i32
  }
  func.func @transform_5(%arg0: i32) -> (i32, i32, i32) {
    %c0_i32 = arith.constant 0 : i32
    %c0_i32_0 = arith.constant 0 : i32
    %c0_i32_1 = arith.constant 0 : i32
    return %arg0, %c0_i32, %c0_i32_0 : i32, i32, i32
  }
}

</mosaic_0001>

<llo_original>
// kernel: tpu_custom_call.1
$region0: #{tpu_custom_call.1}
  #allocation0 [shape = 'u32[]', space=smem, size = 0x4, offset = 0x4, fixed_abs, tag = 'smem constant byte address 0x4 - core index']
  #allocation1 [shape = 'u32[144,128]{1,0:T(1,128)}', space=vmem, size = 0x12000, scoped, tag = 'internal scratch']
  %s0 = inlined_call_operand.vmem [shape: f32[2,8,32], index: 0, kind: input, shape index: {}]
  %s1 = inlined_call_operand.vmem [shape: f32[2,1,8], index: 1, kind: input, shape index: {}]
  %s2 = inlined_call_operand.vmem [shape: f32[4,96], index: 2, kind: input, shape index: {}]
  %s3 = inlined_call_operand.vmem [shape: f32[32,192], index: 3, kind: input, shape index: {}]
  %s4 = inlined_call_operand.vmem [shape: f32[64,32], index: 4, kind: input, shape index: {}]
  %s5 = inlined_call_operand.hbm [shape: f32[2,8,32], index: 5, kind: output, shape index: {}]
  %s6 = sld [smem:[#allocation0]]
  $region53: #{tpu_custom_call.1} parent=0
    _
  %s8 = ssub.s32 1, %s6
  %s9 = scalar_select 0, %s8, %s6
  $region1: #{tpu_custom_call.1} parent=0
    #allocation2 [shape = 'u8[8192]{0}', space=vmem, size = 0x2000, scoped, tag = 'output window, operand 0']
    #allocation3 [shape = 's32[2]{0}', space=sflag, size = 0x8, scoped, tag = 'scoped memory for tpu_custom_call.1']
    %10 = vsyncpa [#allocation3], 0
    %s11 = scalar_lea.sflag [#allocation3], 1
    %12 = vsyncpa %s11, 0
    loop: start=0, step=1, limit=4
    $region2: #{tpu_custom_call.1} parent=1 // loop_pre_header
      _
    $region3: #{tpu_custom_call.1} parent=1 // loop_header
      %s14 = sphi 0, %s18
      %p15 = scmp.ge.s32.totalorder %s14, 4
      %s24 = sphi 0, %s26
      %s27 = sphi 0, %s24
      %s28 = sphi 0, %s27
      %s44 = sphi 0, %s28
      %s50 = sphi 0, %s52
      %s53 = sphi 0, %s50
      %s54 = sphi 0, %s53
      %s70 = sphi 0, %s54
      %s74 = sphi 0, %s74
      %s76 = sphi 0, %s74
      %s77 = sphi 0, %s76
      %s91 = sphi 0, %s77
      %s95 = sphi 0, %s95
      %s97 = sphi 0, %s95
      %s98 = sphi 0, %s97
      %s112 = sphi 0, %s98
      %s116 = sphi 0, %s116
      %s118 = sphi 0, %s116
      %s119 = sphi 0, %s118
      %s133 = sphi 0, %s119
      %s139 = sphi 0, %s141
      %s142 = sphi 0, %s139
      %s143 = sphi 0, %s142
      %s159 = sphi 0, %s143
    $region4: #{tpu_custom_call.1} parent=1 // loop_header_branch
      %17 = sbr.rel (%p15) target = $region8
    $region5: #{tpu_custom_call.1} parent=1 // loop_body
      %s19 = ssub.s32 %s14, 1
      %s20 = ssub.s32 %s14, 2
      %s21 = sadd.s32 %s14, 1
      %s22 = ssub.s32 %s14, %s21
      %p23 = scmp.eq.s32.totalorder %s22, 0
      %s25 = sadd.s32 %s24, 1
      %s26 = scalar_select %p23, %s24, %s25
      %p29 = pneg %p23
      %p30 = scmp.eq.s32.totalorder %s14, 1
      %p31 = por %p29, %p30
      %p32 = scmp.ne.s32.totalorder %s24, %s27
      %p33 = scmp.eq.s32.totalorder %s14, 0
      %p34 = por %p32, %p33
      %p35 = scmp.ne.s32.totalorder %s24, %s27
      %p36 = scmp.eq.s32.totalorder %s19, 1
      %p37 = por %p35, %p36
      %p38 = scmp.ne.s32.totalorder %s27, %s28
      %p39 = scmp.eq.s32.totalorder %s19, 0
      %p40 = por %p38, %p39
      %p41 = scmp.ne.s32.totalorder %s27, %s28
      %p42 = scmp.eq.s32.totalorder %s20, 1
      %p43 = por %p41, %p42
      %p45 = scmp.ne.s32.totalorder %s28, %s44
      %p46 = scmp.eq.s32.totalorder %s20, 0
      %p47 = por %p45, %p46
      %s48 = ssub.s32 %s14, %s21
      %p49 = scmp.eq.s32.totalorder %s48, 0
      %s51 = sadd.s32 %s50, 1
      %s52 = scalar_select %p49, %s50, %s51
      %p55 = pneg %p49
      %p56 = scmp.eq.s32.totalorder %s14, 1
      %p57 = por %p55, %p56
      %p58 = scmp.ne.s32.totalorder %s50, %s53
      %p59 = scmp.eq.s32.totalorder %s14, 0
      %p60 = por %p58, %p59
      %p61 = scmp.ne.s32.totalorder %s50, %s53
      %p62 = scmp.eq.s32.totalorder %s19, 1
      %p63 = por %p61, %p62
      %p64 = scmp.ne.s32.totalorder %s53, %s54
      %p65 = scmp.eq.s32.totalorder %s19, 0
      %p66 = por %p64, %p65
      %p67 = scmp.ne.s32.totalorder %s53, %s54
      %p68 = scmp.eq.s32.totalorder %s20, 1
      %p69 = por %p67, %p68
      %p71 = scmp.ne.s32.totalorder %s54, %s70
      %p72 = scmp.eq.s32.totalorder %s20, 0
      %p73 = por %p71, %p72
      %s75 = sadd.s32 %s74, 1
      %p78 = scmp.eq.s32.totalorder %s14, 1
      %p79 = scmp.ne.s32.totalorder %s74, %s76
      %p80 = scmp.eq.s32.totalorder %s14, 0
      %p81 = por %p79, %p80
      %p82 = scmp.ne.s32.totalorder %s74, %s76
      %p83 = scmp.eq.s32.totalorder %s19, 1
      %p84 = por %p82, %p83
      %p85 = scmp.ne.s32.totalorder %s76, %s77
      %p86 = scmp.eq.s32.totalorder %s19, 0
      %p87 = por %p85, %p86
      %p88 = scmp.ne.s32.totalorder %s76, %s77
      %p89 = scmp.eq.s32.totalorder %s20, 1
      %p90 = por %p88, %p89
      %p92 = scmp.ne.s32.totalorder %s77, %s91
      %p93 = scmp.eq.s32.totalorder %s20, 0
      %p94 = por %p92, %p93
      %s96 = sadd.s32 %s95, 1
      %p99 = scmp.eq.s32.totalorder %s14, 1
      %p100 = scmp.ne.s32.totalorder %s95, %s97
      %p101 = scmp.eq.s32.totalorder %s14, 0
      %p102 = por %p100, %p101
      %p103 = scmp.ne.s32.totalorder %s95, %s97
      %p104 = scmp.eq.s32.totalorder %s19, 1
      %p105 = por %p103, %p104
      %p106 = scmp.ne.s32.totalorder %s97, %s98
      %p107 = scmp.eq.s32.totalorder %s19, 0
      %p108 = por %p106, %p107
      %p109 = scmp.ne.s32.totalorder %s97, %s98
      %p110 = scmp.eq.s32.totalorder %s20, 1
      %p111 = por %p109, %p110
      %p113 = scmp.ne.s32.totalorder %s98, %s112
      %p114 = scmp.eq.s32.totalorder %s20, 0
      %p115 = por %p113, %p114
      %s117 = sadd.s32 %s116, 1
      %p120 = scmp.eq.s32.totalorder %s14, 1
      %p121 = scmp.ne.s32.totalorder %s116, %s118
      %p122 = scmp.eq.s32.totalorder %s14, 0
      %p123 = por %p121, %p122
      %p124 = scmp.ne.s32.totalorder %s116, %s118
      %p125 = scmp.eq.s32.totalorder %s19, 1
      %p126 = por %p124, %p125
      %p127 = scmp.ne.s32.totalorder %s118, %s119
      %p128 = scmp.eq.s32.totalorder %s19, 0
      %p129 = por %p127, %p128
      %p130 = scmp.ne.s32.totalorder %s118, %s119
      %p131 = scmp.eq.s32.totalorder %s20, 1
      %p132 = por %p130, %p131
      %p134 = scmp.ne.s32.totalorder %s119, %s133
      %p135 = scmp.eq.s32.totalorder %s20, 0
      %p136 = por %p134, %p135
      %s137 = ssub.s32 %s14, %s21
      %p138 = scmp.eq.s32.totalorder %s137, 0
      %s140 = sadd.s32 %s139, 1
      %s141 = scalar_select %p138, %s139, %s140
      %p144 = pneg %p138
      %p145 = scmp.eq.s32.totalorder %s14, 1
      %p146 = por %p144, %p145
      %p147 = scmp.ne.s32.totalorder %s139, %s142
      %p148 = scmp.eq.s32.totalorder %s14, 0
      %p149 = por %p147, %p148
      %p150 = scmp.ne.s32.totalorder %s139, %s142
      %p151 = scmp.eq.s32.totalorder %s19, 1
      %p152 = por %p150, %p151
      %p153 = scmp.ne.s32.totalorder %s142, %s143
      %p154 = scmp.eq.s32.totalorder %s19, 0
      %p155 = por %p153, %p154
      %p156 = scmp.ne.s32.totalorder %s142, %s143
      %p157 = scmp.eq.s32.totalorder %s20, 1
      %p158 = por %p156, %p157
      %p160 = scmp.ne.s32.totalorder %s143, %s159
      %p161 = scmp.eq.s32.totalorder %s20, 0
      %p162 = por %p160, %p161
      %p163 = scmp.le.s32.totalorder 1, %s14
      %p164 = scmp.lt.s32.totalorder %s14, 3
      %p165 = pnand %p163, %p164
      %p166 = pneg %p165
      // Predicated region
      $region9: #{tpu_custom_call.1} parent=5 // pred_check
        _
      $region10: #{tpu_custom_call.1} parent=5 // pred_check_branch
        %168 = sbr.rel (%p165) target = $region12
      $region11: #{tpu_custom_call.1} parent=5 // pred_region
        %s169 = ssub.s32 %s14, 1
        // Predicated region
        $region13: #{tpu_custom_call.1} parent=11 // pred_check
          %p170 = pneg %p87
        $region14: #{tpu_custom_call.1} parent=11 // pred_check_branch
          %172 = sbr.rel (%p170) target = $region16
        $region15: #{tpu_custom_call.1} parent=11 // pred_region
          _
        $region16: #{tpu_custom_call.1} parent=11 // pred_fallthru
          _
        // Predicated region
        $region17: #{tpu_custom_call.1} parent=11 // pred_check
          %p173 = pneg %p108
        $region18: #{tpu_custom_call.1} parent=11 // pred_check_branch
          %175 = sbr.rel (%p173) target = $region20
        $region19: #{tpu_custom_call.1} parent=11 // pred_region
          _
        $region20: #{tpu_custom_call.1} parent=11 // pred_fallthru
          _
        // Predicated region
        $region21: #{tpu_custom_call.1} parent=11 // pred_check
          %p176 = pneg %p129
        $region22: #{tpu_custom_call.1} parent=11 // pred_check_branch
          %178 = sbr.rel (%p176) target = $region24
        $region23: #{tpu_custom_call.1} parent=11 // pred_region
          _
        $region24: #{tpu_custom_call.1} parent=11 // pred_fallthru
          _
      $region12: #{tpu_custom_call.1} parent=5 // pred_fallthru
        _
      %p179 = scmp.lt.s32.totalorder %s14, 2
      // Predicated region
      $region25: #{tpu_custom_call.1} parent=5 // pred_check
        %p180 = pneg %p179
      $region26: #{tpu_custom_call.1} parent=5 // pred_check_branch
        %182 = sbr.rel (%p180) target = $region28
      $region27: #{tpu_custom_call.1} parent=5 // pred_region
        // Predicated region
        $region29: #{tpu_custom_call.1} parent=27 // pred_check
          %p183 = pneg %p34
        $region30: #{tpu_custom_call.1} parent=27 // pred_check_branch
          %185 = sbr.rel (%p183) target = $region32
        $region31: #{tpu_custom_call.1} parent=27 // pred_region
          %p186 = scmp.lt.s32.totalorder %s14, 1
          %s187 = scalar_select %p186, %s14, 1
          %s188 = smul.addr %s187, 8
          %s189 = scalar_lea.vmem %s0, %s188
        $region32: #{tpu_custom_call.1} parent=27 // pred_fallthru
          _
        // Predicated region
        $region33: #{tpu_custom_call.1} parent=27 // pred_check
          %p190 = pneg %p60
        $region34: #{tpu_custom_call.1} parent=27 // pred_check_branch
          %192 = sbr.rel (%p190) target = $region36
        $region35: #{tpu_custom_call.1} parent=27 // pred_region
          %p193 = scmp.lt.s32.totalorder %s14, 1
          %s194 = scalar_select %p193, %s14, 1
          %s195 = scalar_lea.vmem %s1, %s194
        $region36: #{tpu_custom_call.1} parent=27 // pred_fallthru
          _
      $region28: #{tpu_custom_call.1} parent=5 // pred_fallthru
        _
      %p196 = scmp.le.s32.totalorder 1, %s14
      %p197 = scmp.lt.s32.totalorder %s14, 3
      %p198 = pnand %p196, %p197
      %p199 = pneg %p198
      // Predicated region
      $region37: #{tpu_custom_call.1} parent=5 // pred_check
        _
      $region38: #{tpu_custom_call.1} parent=5 // pred_check_branch
        %201 = sbr.rel (%p198) target = $region40
      $region39: #{tpu_custom_call.1} parent=5 // pred_region
        %s202 = ssub.s32 %s14, 1
        %p203 = scmp.lt.s32.totalorder %s19, 1
        %s204 = scalar_select %p203, %s19, 1
        %s205 = smul.addr %s204, 8
        %s206 = scalar_lea.vmem %s0, %s205
        %p207 = pneg %p40
        %p208 = pneg %p37
        %p209 = scmp.lt.s32.totalorder %s19, 1
        %s210 = scalar_select %p209, %s19, 1
        %s211 = scalar_lea.vmem %s1, %s210
        %p212 = pneg %p66
        %p213 = pneg %p63
        %p214 = pneg %p87
        %p215 = pneg %p84
        %p216 = pneg %p108
        %p217 = pneg %p105
        %p218 = pneg %p129
        %p219 = pneg %p126
        %p220 = pneg %p155
        %p221 = pneg %p152
        %s222 = sand.u32 %s142, 1
        %s223 = scalar_lea.sflag [#allocation3], %s222
        %s224 = sand.u32 %s142, 1
        %s225 = smul.addr %s224, 8
        %s226 = scalar_lea.vmem [#allocation2], %s225
        %p227 = scmp.lt.s32.totalorder %s19, 1
        %s228 = scalar_select %p227, %s19, 1
        %s229 = smul.addr %s228, 8
        %s230 = scalar_lea.vmem %s0, %s229
        %p231 = scmp.lt.s32.totalorder %s19, 1
        %s232 = scalar_select %p231, %s19, 1
        %s233 = scalar_lea.vmem %s1, %s232
        %v234 = vld [vmem:[%s230] sm:$0xff]
        %v235 = vld [vmem:[%s233] sm:$0x1]
        %v236 = vld [vmem:[%s2] sm:$0xf]
        %v237 = vld [vmem:[%s3] sm:$0xff]
        %v238 = vld [vmem:[%s3 + $0x8] sm:$0xff]
        %v239 = vld [vmem:[%s3 + $0x10] sm:$0xff]
        %v240 = vld [vmem:[%s3 + $0x18] sm:$0xff]
        %v241 = vld [vmem:[%s3 + $0x20] sm:$0xff]
        %v242 = vld [vmem:[%s3 + $0x28] sm:$0xff]
        %v243 = vld [vmem:[%s3 + $0x30] sm:$0xff]
        %v244 = vld [vmem:[%s3 + $0x38] sm:$0xff]
        %v245 = vld [vmem:[%s4] sm:$0xff]
        %v246 = vld [vmem:[%s4 + $0x8] sm:$0xff]
        %v247 = vld [vmem:[%s4 + $0x10] sm:$0xff]
        %v248 = vld [vmem:[%s4 + $0x18] sm:$0xff]
        %v249 = vld [vmem:[%s4 + $0x20] sm:$0xff]
        %v250 = vld [vmem:[%s4 + $0x28] sm:$0xff]
        %v251 = vld [vmem:[%s4 + $0x30] sm:$0xff]
        %v252 = vld [vmem:[%s4 + $0x38] sm:$0xff]
        %v253 = vsub.f32 %v235, 1.0
        %v254 = vmul.f32 %v253, 1e+30
        %vm255 = vcmask 261120
        %v256 = vsel %vm255, %v234, 0.0
        %257 = vadd.xlane.f32.xlu0 %v256
        %v258 = vpop.xlane.xlu0 %257
        %v259 = vrcp.pop 32.0
        %v260 = vmul.f32 %v258, %v259
        %v261 = vsub.f32 %v234, %v260
        %v262 = vmul.f32 %v261, %v261
        %v263 = vsel %vm255, %v262, 0.0
        %264 = vadd.xlane.f32.xlu0 %v263
        %v265 = vpop.xlane.xlu0 %264
        %v266 = vmul.f32 %v265, %v259
        %v267 = vadd.f32 %v266, 1e-12
        %v268 = vrsqrt.pop %v267
        %v269 = vmul.f32 %v261, %v268
        %v270 = vlaneseq
        %v271 = vshrl.u32 %v270, 7
        %v272 = vsub.s32 0, %v271
        %v273 = vrot.slane %v236, %v272
        %v275 = vsel %vm255, %v269, 0
        %277 = vmatprep.subr.mxu0 0.0
        %278 = vmatpush1.msra.mxu0 %v237
        %279 = vmatprep.subr.mxu0 0.0
        %280 = vmatpush1.msra.mxu0 %v239
        %281 = vmatprep.subr.mxu0 0.0
        %282 = vmatpush1.msra.mxu0 %v241
        %283 = vmatprep.subr.mxu0 0.0
        %284 = vmatpush1.msra.mxu0 %v243
        %285 = vmatprep.subr.mxu0 0.0
        %286 = vmatpush1.msra.mxu0 0.0
        %287 = vmatprep.subr.mxu0 0.0
        %288 = vmatpush1.msra.mxu0 0.0
        %289 = vmatprep.subr.mxu0 0.0
        %290 = vmatpush1.msra.mxu0 0.0
        %291 = vmatprep.subr.mxu0 0.0
        %292 = vmatpush1.msra.mxu0 0.0
        %293 = vmatprep.subr.mxu0 0.0
        %294 = vmatpush1.msra.mxu0 0.0
        %295 = vmatprep.subr.mxu0 0.0
        %296 = vmatpush1.msra.mxu0 0.0
        %297 = vmatprep.subr.mxu0 0.0
        %298 = vmatpush1.msra.mxu0 0.0
        %299 = vmatprep.subr.mxu0 0.0
        %300 = vmatpush1.msra.mxu0 0.0
        %301 = vmatprep.subr.mxu0 0.0
        %302 = vmatpush1.msra.mxu0 0.0
        %303 = vmatprep.subr.mxu0 0.0
        %304 = vmatpush1.msra.mxu0 0.0
        %305 = vmatprep.subr.mxu0 0.0
        %306 = vmatpush1.msra.mxu0 0.0
        %307 = vmatprep.subr.mxu0 0.0
        %308 = vmatpush1.msra.mxu0 0.0
        %309 = vmatprep.subr.mxu0 0.0
        %310 = vmatpush1.msra.mxu0 0.0
        %311 = vmatprep.subr.mxu0 0.0
        %312 = vmatpush1.msra.mxu0 0.0
        %313 = vmatprep.subr.mxu0 0.0
        %314 = vmatpush1.msra.mxu0 0.0
        %315 = vmatprep.subr.mxu0 0.0
        %316 = vmatpush1.msra.mxu0 0.0
        %317 = vmatprep.subr.mxu0 0.0
        %318 = vmatpush1.msra.mxu0 0.0
        %319 = vmatprep.subr.mxu0 0.0
        %320 = vmatpush1.msra.mxu0 0.0
        %321 = vmatprep.subr.mxu0 0.0
        %322 = vmatpush1.msra.mxu0 0.0
        %323 = vmatprep.subr.mxu0 0.0
        %324 = vmatpush1.msra.mxu0 0.0
        %325 = vmatprep.subr.mxu0 0.0
        %326 = vmatpush1.msra.mxu0 0.0
        %327 = vmatprep.subr.mxu0 0.0
        %328 = vmatpush1.msra.mxu0 0.0
        %329 = vmatprep.subr.mxu0 0.0
        %330 = vmatpush1.msra.mxu0 0.0
        %331 = vmatprep.subr.mxu0 0.0
        %332 = vmatpush1.msra.mxu0 0.0
        %333 = vmatprep.subr.mxu0 0.0
        %334 = vmatpush1.msra.mxu0 0.0
        %335 = vmatprep.subr.mxu0 0.0
        %336 = vmatpush1.msra.mxu0 0.0
        %337 = vmatprep.subr.mxu0 0.0
        %338 = vmatpush1.msra.mxu0 0.0
        %339 = vmatprep.subr.mxu0 0.0
        %340 = vmatpush1.msra.mxu0 0.0
        %341 = vmatprep.mubr.f32.mxu0 0.0
        %342 = vmatmul.mubr.f32.gmra.mrb[0].mxu0 %v275
        %v343 = vpop.f32.mrb[0].mxu0
        %v344 = vadd.f32 %v273, %v343
        %v345 = vpop.f32.mrb[0].mxu0
        %346 = vdwg.mxu0
        %v348 = vlaneseq
        %v349 = vshrl.u32 %v348, 7
        %v350 = vsub.s32 0, %v349
        %v351 = vrot.slane %v254, %v350
        %354 = vrot.lane.b32.xlu0 %v344, 96
        %v355 = vpop.permute.xlu0 %354
        %vm356 = vcmask 64512
        %v357 = vsel %vm356, %v344, 0
        %v359 = vsel %vm356, %v355, 0
        %361 = vmatprep.subr.mxu0 0.0
        %362 = vmatpush1.xpose.msra.mxu0 %v359
        %363 = vmatprep.subr.mxu0 0.0
        %364 = vmatpush1.xpose.msra.mxu0 0.0
        %365 = vmatprep.subr.mxu0 0.0
        %366 = vmatpush1.xpose.msra.mxu0 0.0
        %367 = vmatprep.subr.mxu0 0.0
        %368 = vmatpush1.xpose.msra.mxu0 0.0
        %369 = vmatprep.subr.mxu0 0.0
        %370 = vmatpush1.xpose.msra.mxu0 0.0
        %371 = vmatprep.subr.mxu0 0.0
        %372 = vmatpush1.xpose.msra.mxu0 0.0
        %373 = vmatprep.subr.mxu0 0.0
        %374 = vmatpush1.xpose.msra.mxu0 0.0
        %375 = vmatprep.subr.mxu0 0.0
        %376 = vmatpush1.xpose.msra.mxu0 0.0
        %377 = vmatprep.subr.mxu0 0.0
        %378 = vmatpush1.xpose.msra.mxu0 0.0
        %379 = vmatprep.subr.mxu0 0.0
        %380 = vmatpush1.xpose.msra.mxu0 0.0
        %381 = vmatprep.subr.mxu0 0.0
        %382 = vmatpush1.xpose.msra.mxu0 0.0
        %383 = vmatprep.subr.mxu0 0.0
        %384 = vmatpush1.xpose.msra.mxu0 0.0
        %385 = vmatprep.subr.mxu0 0.0
        %386 = vmatpush1.xpose.msra.mxu0 0.0
        %387 = vmatprep.subr.mxu0 0.0
        %388 = vmatpush1.xpose.msra.mxu0 0.0
        %389 = vmatprep.subr.mxu0 0.0
        %390 = vmatpush1.xpose.msra.mxu0 0.0
        %391 = vmatprep.subr.mxu0 0.0
        %392 = vmatpush1.xpose.msra.mxu0 0.0
        %393 = vmatprep.subr.mxu0 0.0
        %394 = vmatpush1.xpose.msra.mxu0 0.0
        %395 = vmatprep.subr.mxu0 0.0
        %396 = vmatpush1.xpose.msra.mxu0 0.0
        %397 = vmatprep.subr.mxu0 0.0
        %398 = vmatpush1.xpose.msra.mxu0 0.0
        %399 = vmatprep.subr.mxu0 0.0
        %400 = vmatpush1.xpose.msra.mxu0 0.0
        %401 = vmatprep.subr.mxu0 0.0
        %402 = vmatpush1.xpose.msra.mxu0 0.0
        %403 = vmatprep.subr.mxu0 0.0
        %404 = vmatpush1.xpose.msra.mxu0 0.0
        %405 = vmatprep.subr.mxu0 0.0
        %406 = vmatpush1.xpose.msra.mxu0 0.0
        %407 = vmatprep.subr.mxu0 0.0
        %408 = vmatpush1.xpose.msra.mxu0 0.0
        %409 = vmatprep.subr.mxu0 0.0
        %410 = vmatpush1.xpose.msra.mxu0 0.0
        %411 = vmatprep.subr.mxu0 0.0
        %412 = vmatpush1.xpose.msra.mxu0 0.0
        %413 = vmatprep.subr.mxu0 0.0
        %414 = vmatpush1.xpose.msra.mxu0 0.0
        %415 = vmatprep.subr.mxu0 0.0
        %416 = vmatpush1.xpose.msra.mxu0 0.0
        %417 = vmatprep.subr.mxu0 0.0
        %418 = vmatpush1.xpose.msra.mxu0 0.0
        %419 = vmatprep.subr.mxu0 0.0
        %420 = vmatpush1.xpose.msra.mxu0 0.0
        %421 = vmatprep.subr.mxu0 0.0
        %422 = vmatpush1.xpose.msra.mxu0 0.0
        %423 = vmatprep.subr.mxu0 0.0
        %424 = vmatpush1.xpose.msra.mxu0 0.0
        %425 = vmatprep.mubr.f32.mxu0 0.0
        %426 = vmatmul.mubr.f32.gmra.mrb[0].mxu0 %v357
        %v427 = vpop.f32.mrb[0].mxu0
        %v428 = vadd.f32 %v351, %v427
        %v429 = vpop.f32.mrb[0].mxu0
        %430 = vdwg.mxu0
        %v431 = vsel %vm356, %v428, -inf
        %432 = vmax.xlane.f32.xlu0 %v431
        %v433 = vpop.xlane.xlu0 %432
        %v434 = vsub.f32 %v428, %v433
        %v435 = vmul.f32 %v434, 1.442695
        %v436 = vpow.pop %v435
        %v438 = vlaneseq
        %v439 = vshrl.u32 %v438, 7
        %v440 = vsub.s32 0, %v439
        %v441 = vrot.slane %v235, %v440
        %v443 = vmul.f32 %v436, %v441
        %v444 = vsel %vm356, %v443, 0.0
        %445 = vadd.xlane.f32.xlu0 %v444
        %v446 = vpop.xlane.xlu0 %445
        %v447 = vmax.f32 %v446, 1e-30
        %v448 = vrcp.pop %v447
        %v449 = vmul.f32 %v443, %v448
        %450 = vrot.lane.b32.xlu0 %v344, 64
        %v451 = vpop.permute.xlu0 %450
        %v454 = vsel %vm356, %v449, 0
        %456 = vmatprep.subr.mxu0 0.0
        %457 = vmatpush1.msra.mxu0 %v451
        %458 = vmatprep.subr.mxu0 0.0
        %459 = vmatpush1.msra.mxu0 0.0
        %460 = vmatprep.subr.mxu0 0.0
        %461 = vmatpush1.msra.mxu0 0.0
        %462 = vmatprep.subr.mxu0 0.0
        %463 = vmatpush1.msra.mxu0 0.0
        %464 = vmatprep.subr.mxu0 0.0
        %465 = vmatpush1.msra.mxu0 0.0
        %466 = vmatprep.subr.mxu0 0.0
        %467 = vmatpush1.msra.mxu0 0.0
        %468 = vmatprep.subr.mxu0 0.0
        %469 = vmatpush1.msra.mxu0 0.0
        %470 = vmatprep.subr.mxu0 0.0
        %471 = vmatpush1.msra.mxu0 0.0
        %472 = vmatprep.subr.mxu0 0.0
        %473 = vmatpush1.msra.mxu0 0.0
        %474 = vmatprep.subr.mxu0 0.0
        %475 = vmatpush1.msra.mxu0 0.0
        %476 = vmatprep.subr.mxu0 0.0
        %477 = vmatpush1.msra.mxu0 0.0
        %478 = vmatprep.subr.mxu0 0.0
        %479 = vmatpush1.msra.mxu0 0.0
        %480 = vmatprep.subr.mxu0 0.0
        %481 = vmatpush1.msra.mxu0 0.0
        %482 = vmatprep.subr.mxu0 0.0
        %483 = vmatpush1.msra.mxu0 0.0
        %484 = vmatprep.subr.mxu0 0.0
        %485 = vmatpush1.msra.mxu0 0.0
        %486 = vmatprep.subr.mxu0 0.0
        %487 = vmatpush1.msra.mxu0 0.0
        %488 = vmatprep.subr.mxu0 0.0
        %489 = vmatpush1.msra.mxu0 0.0
        %490 = vmatprep.subr.mxu0 0.0
        %491 = vmatpush1.msra.mxu0 0.0
        %492 = vmatprep.subr.mxu0 0.0
        %493 = vmatpush1.msra.mxu0 0.0
        %494 = vmatprep.subr.mxu0 0.0
        %495 = vmatpush1.msra.mxu0 0.0
        %496 = vmatprep.subr.mxu0 0.0
        %497 = vmatpush1.msra.mxu0 0.0
        %498 = vmatprep.subr.mxu0 0.0
        %499 = vmatpush1.msra.mxu0 0.0
        %500 = vmatprep.subr.mxu0 0.0
        %501 = vmatpush1.msra.mxu0 0.0
        %502 = vmatprep.subr.mxu0 0.0
        %503 = vmatpush1.msra.mxu0 0.0
        %504 = vmatprep.subr.mxu0 0.0
        %505 = vmatpush1.msra.mxu0 0.0
        %506 = vmatprep.subr.mxu0 0.0
        %507 = vmatpush1.msra.mxu0 0.0
        %508 = vmatprep.subr.mxu0 0.0
        %509 = vmatpush1.msra.mxu0 0.0
        %510 = vmatprep.subr.mxu0 0.0
        %511 = vmatpush1.msra.mxu0 0.0
        %512 = vmatprep.subr.mxu0 0.0
        %513 = vmatpush1.msra.mxu0 0.0
        %514 = vmatprep.subr.mxu0 0.0
        %515 = vmatpush1.msra.mxu0 0.0
        %516 = vmatprep.subr.mxu0 0.0
        %517 = vmatpush1.msra.mxu0 0.0
        %518 = vmatprep.subr.mxu0 0.0
        %519 = vmatpush1.msra.mxu0 0.0
        %520 = vmatprep.mubr.f32.mxu0 0.0
        %521 = vmatmul.mubr.f32.gmra.mrb[0].mxu0 %v454
        %v522 = vpop.f32.mrb[0].mxu0
        %v523 = vadd.f32 0.0, %v522
        %v524 = vpop.f32.mrb[0].mxu0
        %525 = vdwg.mxu0
        %526 = vrot.lane.b32.xlu0 %v344, 120
        %v527 = vpop.permute.xlu0 %526
        %528 = vrot.lane.b32.xlu0 %v344, 88
        %v529 = vpop.permute.xlu0 %528
        %v530 = vsel %vm356, %v527, 0
        %v532 = vsel %vm356, %v529, 0
        %534 = vmatprep.subr.mxu0 0.0
        %535 = vmatpush1.xpose.msra.mxu0 %v532
        %536 = vmatprep.subr.mxu0 0.0
        %537 = vmatpush1.xpose.msra.mxu0 0.0
        %538 = vmatprep.subr.mxu0 0.0
        %539 = vmatpush1.xpose.msra.mxu0 0.0
        %540 = vmatprep.subr.mxu0 0.0
        %541 = vmatpush1.xpose.msra.mxu0 0.0
        %542 = vmatprep.subr.mxu0 0.0
        %543 = vmatpush1.xpose.msra.mxu0 0.0
        %544 = vmatprep.subr.mxu0 0.0
        %545 = vmatpush1.xpose.msra.mxu0 0.0
        %546 = vmatprep.subr.mxu0 0.0
        %547 = vmatpush1.xpose.msra.mxu0 0.0
        %548 = vmatprep.subr.mxu0 0.0
        %549 = vmatpush1.xpose.msra.mxu0 0.0
        %550 = vmatprep.subr.mxu0 0.0
        %551 = vmatpush1.xpose.msra.mxu0 0.0
        %552 = vmatprep.subr.mxu0 0.0
        %553 = vmatpush1.xpose.msra.mxu0 0.0
        %554 = vmatprep.subr.mxu0 0.0
        %555 = vmatpush1.xpose.msra.mxu0 0.0
        %556 = vmatprep.subr.mxu0 0.0
        %557 = vmatpush1.xpose.msra.mxu0 0.0
        %558 = vmatprep.subr.mxu0 0.0
        %559 = vmatpush1.xpose.msra.mxu0 0.0
        %560 = vmatprep.subr.mxu0 0.0
        %561 = vmatpush1.xpose.msra.mxu0 0.0
        %562 = vmatprep.subr.mxu0 0.0
        %563 = vmatpush1.xpose.msra.mxu0 0.0
        %564 = vmatprep.subr.mxu0 0.0
        %565 = vmatpush1.xpose.msra.mxu0 0.0
        %566 = vmatprep.subr.mxu0 0.0
        %567 = vmatpush1.xpose.msra.mxu0 0.0
        %568 = vmatprep.subr.mxu0 0.0
        %569 = vmatpush1.xpose.msra.mxu0 0.0
        %570 = vmatprep.subr.mxu0 0.0
        %571 = vmatpush1.xpose.msra.mxu0 0.0
        %572 = vmatprep.subr.mxu0 0.0
        %573 = vmatpush1.xpose.msra.mxu0 0.0
        %574 = vmatprep.subr.mxu0 0.0
        %575 = vmatpush1.xpose.msra.mxu0 0.0
        %576 = vmatprep.subr.mxu0 0.0
        %577 = vmatpush1.xpose.msra.mxu0 0.0
        %578 = vmatprep.subr.mxu0 0.0
        %579 = vmatpush1.xpose.msra.mxu0 0.0
        %580 = vmatprep.subr.mxu0 0.0
        %581 = vmatpush1.xpose.msra.mxu0 0.0
        %582 = vmatprep.subr.mxu0 0.0
        %583 = vmatpush1.xpose.msra.mxu0 0.0
        %584 = vmatprep.subr.mxu0 0.0
        %585 = vmatpush1.xpose.msra.mxu0 0.0
        %586 = vmatprep.subr.mxu0 0.0
        %587 = vmatpush1.xpose.msra.mxu0 0.0
        %588 = vmatprep.subr.mxu0 0.0
        %589 = vmatpush1.xpose.msra.mxu0 0.0
        %590 = vmatprep.subr.mxu0 0.0
        %591 = vmatpush1.xpose.msra.mxu0 0.0
        %592 = vmatprep.subr.mxu0 0.0
        %593 = vmatpush1.xpose.msra.mxu0 0.0
        %594 = vmatprep.subr.mxu0 0.0
        %595 = vmatpush1.xpose.msra.mxu0 0.0
        %596 = vmatprep.subr.mxu0 0.0
        %597 = vmatpush1.xpose.msra.mxu0 0.0
        %598 = vmatprep.mubr.f32.mxu0 0.0
        %599 = vmatmul.mubr.f32.gmra.mrb[0].mxu0 %v530
        %v600 = vpop.f32.mrb[0].mxu0
        %v601 = vadd.f32 %v351, %v600
        %v602 = vpop.f32.mrb[0].mxu0
        %603 = vdwg.mxu0
        %v604 = vsel %vm356, %v601, -inf
        %605 = vmax.xlane.f32.xlu0 %v604
        %v606 = vpop.xlane.xlu0 %605
        %v607 = vsub.f32 %v601, %v606
        %v608 = vmul.f32 %v607, 1.442695
        %v609 = vpow.pop %v608
        %v610 = vmul.f32 %v609, %v441
        %v611 = vsel %vm356, %v610, 0.0
        %612 = vadd.xlane.f32.xlu0 %v611
        %v613 = vpop.xlane.xlu0 %612
        %v614 = vmax.f32 %v613, 1e-30
        %v615 = vrcp.pop %v614
        %v616 = vmul.f32 %v610, %v615
        %617 = vrot.lane.b32.xlu0 %v344, 56
        %v618 = vpop.permute.xlu0 %617
        %v621 = vsel %vm356, %v616, 0
        %623 = vmatprep.subr.mxu0 0.0
        %624 = vmatpush1.msra.mxu0 %v618
        %625 = vmatprep.subr.mxu0 0.0
        %626 = vmatpush1.msra.mxu0 0.0
        %627 = vmatprep.subr.mxu0 0.0
        %628 = vmatpush1.msra.mxu0 0.0
        %629 = vmatprep.subr.mxu0 0.0
        %630 = vmatpush1.msra.mxu0 0.0
        %631 = vmatprep.subr.mxu0 0.0
        %632 = vmatpush1.msra.mxu0 0.0
        %633 = vmatprep.subr.mxu0 0.0
        %634 = vmatpush1.msra.mxu0 0.0
        %635 = vmatprep.subr.mxu0 0.0
        %636 = vmatpush1.msra.mxu0 0.0
        %637 = vmatprep.subr.mxu0 0.0
        %638 = vmatpush1.msra.mxu0 0.0
        %639 = vmatprep.subr.mxu0 0.0
        %640 = vmatpush1.msra.mxu0 0.0
        %641 = vmatprep.subr.mxu0 0.0
        %642 = vmatpush1.msra.mxu0 0.0
        %643 = vmatprep.subr.mxu0 0.0
        %644 = vmatpush1.msra.mxu0 0.0
        %645 = vmatprep.subr.mxu0 0.0
        %646 = vmatpush1.msra.mxu0 0.0
        %647 = vmatprep.subr.mxu0 0.0
        %648 = vmatpush1.msra.mxu0 0.0
        %649 = vmatprep.subr.mxu0 0.0
        %650 = vmatpush1.msra.mxu0 0.0
        %651 = vmatprep.subr.mxu0 0.0
        %652 = vmatpush1.msra.mxu0 0.0
        %653 = vmatprep.subr.mxu0 0.0
        %654 = vmatpush1.msra.mxu0 0.0
        %655 = vmatprep.subr.mxu0 0.0
        %656 = vmatpush1.msra.mxu0 0.0
        %657 = vmatprep.subr.mxu0 0.0
        %658 = vmatpush1.msra.mxu0 0.0
        %659 = vmatprep.subr.mxu0 0.0
        %660 = vmatpush1.msra.mxu0 0.0
        %661 = vmatprep.subr.mxu0 0.0
        %662 = vmatpush1.msra.mxu0 0.0
        %663 = vmatprep.subr.mxu0 0.0
        %664 = vmatpush1.msra.mxu0 0.0
        %665 = vmatprep.subr.mxu0 0.0
        %666 = vmatpush1.msra.mxu0 0.0
        %667 = vmatprep.subr.mxu0 0.0
        %668 = vmatpush1.msra.mxu0 0.0
        %669 = vmatprep.subr.mxu0 0.0
        %670 = vmatpush1.msra.mxu0 0.0
        %671 = vmatprep.subr.mxu0 0.0
        %672 = vmatpush1.msra.mxu0 0.0
        %673 = vmatprep.subr.mxu0 0.0
        %674 = vmatpush1.msra.mxu0 0.0
        %675 = vmatprep.subr.mxu0 0.0
        %676 = vmatpush1.msra.mxu0 0.0
        %677 = vmatprep.subr.mxu0 0.0
        %678 = vmatpush1.msra.mxu0 0.0
        %679 = vmatprep.subr.mxu0 0.0
        %680 = vmatpush1.msra.mxu0 0.0
        %681 = vmatprep.subr.mxu0 0.0
        %682 = vmatpush1.msra.mxu0 0.0
        %683 = vmatprep.subr.mxu0 0.0
        %684 = vmatpush1.msra.mxu0 0.0
        %685 = vmatprep.subr.mxu0 0.0
        %686 = vmatpush1.msra.mxu0 0.0
        %687 = vmatprep.mubr.f32.mxu0 0.0
        %688 = vmatmul.mubr.f32.gmra.mrb[0].mxu0 %v621
        %v689 = vpop.f32.mrb[0].mxu0
        %v690 = vadd.f32 0.0, %v689
        %v691 = vpop.f32.mrb[0].mxu0
        %692 = vdwg.mxu0
        %693 = vrot.lane.b32.xlu0 %v344, 112
        %v694 = vpop.permute.xlu0 %693
        %695 = vrot.lane.b32.xlu0 %v344, 80
        %v696 = vpop.permute.xlu0 %695
        %v697 = vsel %vm356, %v694, 0
        %v699 = vsel %vm356, %v696, 0
        %701 = vmatprep.subr.mxu0 0.0
        %702 = vmatpush1.xpose.msra.mxu0 %v699
        %703 = vmatprep.subr.mxu0 0.0
        %704 = vmatpush1.xpose.msra.mxu0 0.0
        %705 = vmatprep.subr.mxu0 0.0
        %706 = vmatpush1.xpose.msra.mxu0 0.0
        %707 = vmatprep.subr.mxu0 0.0
        %708 = vmatpush1.xpose.msra.mxu0 0.0
        %709 = vmatprep.subr.mxu0 0.0
        %710 = vmatpush1.xpose.msra.mxu0 0.0
        %711 = vmatprep.subr.mxu0 0.0
        %712 = vmatpush1.xpose.msra.mxu0 0.0
        %713 = vmatprep.subr.mxu0 0.0
        %714 = vmatpush1.xpose.msra.mxu0 0.0
        %715 = vmatprep.subr.mxu0 0.0
        %716 = vmatpush1.xpose.msra.mxu0 0.0
        %717 = vmatprep.subr.mxu0 0.0
        %718 = vmatpush1.xpose.msra.mxu0 0.0
        %719 = vmatprep.subr.mxu0 0.0
        %720 = vmatpush1.xpose.msra.mxu0 0.0
        %721 = vmatprep.subr.mxu0 0.0
        %722 = vmatpush1.xpose.msra.mxu0 0.0
        %723 = vmatprep.subr.mxu0 0.0
        %724 = vmatpush1.xpose.msra.mxu0 0.0
        %725 = vmatprep.subr.mxu0 0.0
        %726 = vmatpush1.xpose.msra.mxu0 0.0
        %727 = vmatprep.subr.mxu0 0.0
        %728 = vmatpush1.xpose.msra.mxu0 0.0
        %729 = vmatprep.subr.mxu0 0.0
        %730 = vmatpush1.xpose.msra.mxu0 0.0
        %731 = vmatprep.subr.mxu0 0.0
        %732 = vmatpush1.xpose.msra.mxu0 0.0
        %733 = vmatprep.subr.mxu0 0.0
        %734 = vmatpush1.xpose.msra.mxu0 0.0
        %735 = vmatprep.subr.mxu0 0.0
        %736 = vmatpush1.xpose.msra.mxu0 0.0
        %737 = vmatprep.subr.mxu0 0.0
        %738 = vmatpush1.xpose.msra.mxu0 0.0
        %739 = vmatprep.subr.mxu0 0.0
        %740 = vmatpush1.xpose.msra.mxu0 0.0
        %741 = vmatprep.subr.mxu0 0.0
        %742 = vmatpush1.xpose.msra.mxu0 0.0
        %743 = vmatprep.subr.mxu0 0.0
        %744 = vmatpush1.xpose.msra.mxu0 0.0
        %745 = vmatprep.subr.mxu0 0.0
        %746 = vmatpush1.xpose.msra.mxu0 0.0
        %747 = vmatprep.subr.mxu0 0.0
        %748 = vmatpush1.xpose.msra.mxu0 0.0
        %749 = vmatprep.subr.mxu0 0.0
        %750 = vmatpush1.xpose.msra.mxu0 0.0
        %751 = vmatprep.subr.mxu0 0.0
        %752 = vmatpush1.xpose.msra.mxu0 0.0
        %753 = vmatprep.subr.mxu0 0.0
        %754 = vmatpush1.xpose.msra.mxu0 0.0
        %755 = vmatprep.subr.mxu0 0.0
        %756 = vmatpush1.xpose.msra.mxu0 0.0
        %757 = vmatprep.subr.mxu0 0.0
        %758 = vmatpush1.xpose.msra.mxu0 0.0
        %759 = vmatprep.subr.mxu0 0.0
        %760 = vmatpush1.xpose.msra.mxu0 0.0
        %761 = vmatprep.subr.mxu0 0.0
        %762 = vmatpush1.xpose.msra.mxu0 0.0
        %763 = vmatprep.subr.mxu0 0.0
        %764 = vmatpush1.xpose.msra.mxu0 0.0
        %765 = vmatprep.mubr.f32.mxu0 0.0
        %766 = vmatmul.mubr.f32.gmra.mrb[0].mxu0 %v697
        %v767 = vpop.f32.mrb[0].mxu0
        %v768 = vadd.f32 %v351, %v767
        %v769 = vpop.f32.mrb[0].mxu0
        %770 = vdwg.mxu0
        %v771 = vsel %vm356, %v768, -inf
        %772 = vmax.xlane.f32.xlu0 %v771
        %v773 = vpop.xlane.xlu0 %772
        %v774 = vsub.f32 %v768, %v773
        %v775 = vmul.f32 %v774, 1.442695
        %v776 = vpow.pop %v775
        %v777 = vmul.f32 %v776, %v441
        %v778 = vsel %vm356, %v777, 0.0
        %779 = vadd.xlane.f32.xlu0 %v778
        %v780 = vpop.xlane.xlu0 %779
        %v781 = vmax.f32 %v780, 1e-30
        %v782 = vrcp.pop %v781
        %v783 = vmul.f32 %v777, %v782
        %784 = vrot.lane.b32.xlu0 %v344, 48
        %v785 = vpop.permute.xlu0 %784
        %v788 = vsel %vm356, %v783, 0
        %790 = vmatprep.subr.mxu0 0.0
        %791 = vmatpush1.msra.mxu0 %v785
        %792 = vmatprep.subr.mxu0 0.0
        %793 = vmatpush1.msra.mxu0 0.0
        %794 = vmatprep.subr.mxu0 0.0
        %795 = vmatpush1.msra.mxu0 0.0
        %796 = vmatprep.subr.mxu0 0.0
        %797 = vmatpush1.msra.mxu0 0.0
        %798 = vmatprep.subr.mxu0 0.0
        %799 = vmatpush1.msra.mxu0 0.0
        %800 = vmatprep.subr.mxu0 0.0
        %801 = vmatpush1.msra.mxu0 0.0
        %802 = vmatprep.subr.mxu0 0.0
        %803 = vmatpush1.msra.mxu0 0.0
        %804 = vmatprep.subr.mxu0 0.0
        %805 = vmatpush1.msra.mxu0 0.0
        %806 = vmatprep.subr.mxu0 0.0
        %807 = vmatpush1.msra.mxu0 0.0
        %808 = vmatprep.subr.mxu0 0.0
        %809 = vmatpush1.msra.mxu0 0.0
        %810 = vmatprep.subr.mxu0 0.0
        %811 = vmatpush1.msra.mxu0 0.0
        %812 = vmatprep.subr.mxu0 0.0
        %813 = vmatpush1.msra.mxu0 0.0
        %814 = vmatprep.subr.mxu0 0.0
        %815 = vmatpush1.msra.mxu0 0.0
        %816 = vmatprep.subr.mxu0 0.0
        %817 = vmatpush1.msra.mxu0 0.0
        %818 = vmatprep.subr.mxu0 0.0
        %819 = vmatpush1.msra.mxu0 0.0
        %820 = vmatprep.subr.mxu0 0.0
        %821 = vmatpush1.msra.mxu0 0.0
        %822 = vmatprep.subr.mxu0 0.0
        %823 = vmatpush1.msra.mxu0 0.0
        %824 = vmatprep.subr.mxu0 0.0
        %825 = vmatpush1.msra.mxu0 0.0
        %826 = vmatprep.subr.mxu0 0.0
        %827 = vmatpush1.msra.mxu0 0.0
        %828 = vmatprep.subr.mxu0 0.0
        %829 = vmatpush1.msra.mxu0 0.0
        %830 = vmatprep.subr.mxu0 0.0
        %831 = vmatpush1.msra.mxu0 0.0
        %832 = vmatprep.subr.mxu0 0.0
        %833 = vmatpush1.msra.mxu0 0.0
        %834 = vmatprep.subr.mxu0 0.0
        %835 = vmatpush1.msra.mxu0 0.0
        %836 = vmatprep.subr.mxu0 0.0
        %837 = vmatpush1.msra.mxu0 0.0
        %838 = vmatprep.subr.mxu0 0.0
        %839 = vmatpush1.msra.mxu0 0.0
        %840 = vmatprep.subr.mxu0 0.0
        %841 = vmatpush1.msra.mxu0 0.0
        %842 = vmatprep.subr.mxu0 0.0
        %843 = vmatpush1.msra.mxu0 0.0
        %844 = vmatprep.subr.mxu0 0.0
        %845 = vmatpush1.msra.mxu0 0.0
        %846 = vmatprep.subr.mxu0 0.0
        %847 = vmatpush1.msra.mxu0 0.0
        %848 = vmatprep.subr.mxu0 0.0
        %849 = vmatpush1.msra.mxu0 0.0
        %850 = vmatprep.subr.mxu0 0.0
        %851 = vmatpush1.msra.mxu0 0.0
        %852 = vmatprep.subr.mxu0 0.0
        %853 = vmatpush1.msra.mxu0 0.0
        %854 = vmatprep.mubr.f32.mxu0 0.0
        %855 = vmatmul.mubr.f32.gmra.mrb[0].mxu0 %v788
        %v856 = vpop.f32.mrb[0].mxu0
        %v857 = vadd.f32 0.0, %v856
        %v858 = vpop.f32.mrb[0].mxu0
        %859 = vdwg.mxu0
        %860 = vrot.lane.b32.xlu0 %v344, 104
        %v861 = vpop.permute.xlu0 %860
        %862 = vrot.lane.b32.xlu0 %v344, 72
        %v863 = vpop.permute.xlu0 %862
        %v864 = vsel %vm356, %v861, 0
        %v866 = vsel %vm356, %v863, 0
        %868 = vmatprep.subr.mxu0 0.0
        %869 = vmatpush1.xpose.msra.mxu0 %v866
        %870 = vmatprep.subr.mxu0 0.0
        %871 = vmatpush1.xpose.msra.mxu0 0.0
        %872 = vmatprep.subr.mxu0 0.0
        %873 = vmatpush1.xpose.msra.mxu0 0.0
        %874 = vmatprep.subr.mxu0 0.0
        %875 = vmatpush1.xpose.msra.mxu0 0.0
        %876 = vmatprep.subr.mxu0 0.0
        %877 = vmatpush1.xpose.msra.mxu0 0.0
        %878 = vmatprep.subr.mxu0 0.0
        %879 = vmatpush1.xpose.msra.mxu0 0.0
        %880 = vmatprep.subr.mxu0 0.0
        %881 = vmatpush1.xpose.msra.mxu0 0.0
        %882 = vmatprep.subr.mxu0 0.0
        %883 = vmatpush1.xpose.msra.mxu0 0.0
        %884 = vmatprep.subr.mxu0 0.0
        %885 = vmatpush1.xpose.msra.mxu0 0.0
        %886 = vmatprep.subr.mxu0 0.0
        %887 = vmatpush1.xpose.msra.mxu0 0.0
        %888 = vmatprep.subr.mxu0 0.0
        %889 = vmatpush1.xpose.msra.mxu0 0.0
        %890 = vmatprep.subr.mxu0 0.0
        %891 = vmatpush1.xpose.msra.mxu0 0.0
        %892 = vmatprep.subr.mxu0 0.0
        %893 = vmatpush1.xpose.msra.mxu0 0.0
        %894 = vmatprep.subr.mxu0 0.0
        %895 = vmatpush1.xpose.msra.mxu0 0.0
        %896 = vmatprep.subr.mxu0 0.0
        %897 = vmatpush1.xpose.msra.mxu0 0.0
        %898 = vmatprep.subr.mxu0 0.0
        %899 = vmatpush1.xpose.msra.mxu0 0.0
        %900 = vmatprep.subr.mxu0 0.0
        %901 = vmatpush1.xpose.msra.mxu0 0.0
        %902 = vmatprep.subr.mxu0 0.0
        %903 = vmatpush1.xpose.msra.mxu0 0.0
        %904 = vmatprep.subr.mxu0 0.0
        %905 = vmatpush1.xpose.msra.mxu0 0.0
        %906 = vmatprep.subr.mxu0 0.0
        %907 = vmatpush1.xpose.msra.mxu0 0.0
        %908 = vmatprep.subr.mxu0 0.0
        %909 = vmatpush1.xpose.msra.mxu0 0.0
        %910 = vmatprep.subr.mxu0 0.0
        %911 = vmatpush1.xpose.msra.mxu0 0.0
        %912 = vmatprep.subr.mxu0 0.0
        %913 = vmatpush1.xpose.msra.mxu0 0.0
        %914 = vmatprep.subr.mxu0 0.0
        %915 = vmatpush1.xpose.msra.mxu0 0.0
        %916 = vmatprep.subr.mxu0 0.0
        %917 = vmatpush1.xpose.msra.mxu0 0.0
        %918 = vmatprep.subr.mxu0 0.0
        %919 = vmatpush1.xpose.msra.mxu0 0.0
        %920 = vmatprep.subr.mxu0 0.0
        %921 = vmatpush1.xpose.msra.mxu0 0.0
        %922 = vmatprep.subr.mxu0 0.0
        %923 = vmatpush1.xpose.msra.mxu0 0.0
        %924 = vmatprep.subr.mxu0 0.0
        %925 = vmatpush1.xpose.msra.mxu0 0.0
        %926 = vmatprep.subr.mxu0 0.0
        %927 = vmatpush1.xpose.msra.mxu0 0.0
        %928 = vmatprep.subr.mxu0 0.0
        %929 = vmatpush1.xpose.msra.mxu0 0.0
        %930 = vmatprep.subr.mxu0 0.0
        %931 = vmatpush1.xpose.msra.mxu0 0.0
        %932 = vmatprep.mubr.f32.mxu0 0.0
        %933 = vmatmul.mubr.f32.gmra.mrb[0].mxu0 %v864
        %v934 = vpop.f32.mrb[0].mxu0
        %v935 = vadd.f32 %v351, %v934
        %v936 = vpop.f32.mrb[0].mxu0
        %937 = vdwg.mxu0
        %v938 = vsel %vm356, %v935, -inf
        %939 = vmax.xlane.f32.xlu0 %v938
        %v940 = vpop.xlane.xlu0 %939
        %v941 = vsub.f32 %v935, %v940
        %v942 = vmul.f32 %v941, 1.442695
        %v943 = vpow.pop %v942
        %v944 = vmul.f32 %v943, %v441
        %v945 = vsel %vm356, %v944, 0.0
        %946 = vadd.xlane.f32.xlu0 %v945
        %v947 = vpop.xlane.xlu0 %946
        %v948 = vmax.f32 %v947, 1e-30
        %v949 = vrcp.pop %v948
        %v950 = vmul.f32 %v944, %v949
        %951 = vrot.lane.b32.xlu0 %v344, 40
        %v952 = vpop.permute.xlu0 %951
        %v955 = vsel %vm356, %v950, 0
        %957 = vmatprep.subr.mxu0 0.0
        %958 = vmatpush1.msra.mxu0 %v952
        %959 = vmatprep.subr.mxu0 0.0
        %960 = vmatpush1.msra.mxu0 0.0
        %961 = vmatprep.subr.mxu0 0.0
        %962 = vmatpush1.msra.mxu0 0.0
        %963 = vmatprep.subr.mxu0 0.0
        %964 = vmatpush1.msra.mxu0 0.0
        %965 = vmatprep.subr.mxu0 0.0
        %966 = vmatpush1.msra.mxu0 0.0
        %967 = vmatprep.subr.mxu0 0.0
        %968 = vmatpush1.msra.mxu0 0.0
        %969 = vmatprep.subr.mxu0 0.0
        %970 = vmatpush1.msra.mxu0 0.0
        %971 = vmatprep.subr.mxu0 0.0
        %972 = vmatpush1.msra.mxu0 0.0
        %973 = vmatprep.subr.mxu0 0.0
        %974 = vmatpush1.msra.mxu0 0.0
        %975 = vmatprep.subr.mxu0 0.0
        %976 = vmatpush1.msra.mxu0 0.0
        %977 = vmatprep.subr.mxu0 0.0
        %978 = vmatpush1.msra.mxu0 0.0
        %979 = vmatprep.subr.mxu0 0.0
        %980 = vmatpush1.msra.mxu0 0.0
        %981 = vmatprep.subr.mxu0 0.0
        %982 = vmatpush1.msra.mxu0 0.0
        %983 = vmatprep.subr.mxu0 0.0
        %984 = vmatpush1.msra.mxu0 0.0
        %985 = vmatprep.subr.mxu0 0.0
        %986 = vmatpush1.msra.mxu0 0.0
        %987 = vmatprep.subr.mxu0 0.0
        %988 = vmatpush1.msra.mxu0 0.0
        %989 = vmatprep.subr.mxu0 0.0
        %990 = vmatpush1.msra.mxu0 0.0
        %991 = vmatprep.subr.mxu0 0.0
        %992 = vmatpush1.msra.mxu0 0.0
        %993 = vmatprep.subr.mxu0 0.0
        %994 = vmatpush1.msra.mxu0 0.0
        %995 = vmatprep.subr.mxu0 0.0
        %996 = vmatpush1.msra.mxu0 0.0
        %997 = vmatprep.subr.mxu0 0.0
        %998 = vmatpush1.msra.mxu0 0.0
        %999 = vmatprep.subr.mxu0 0.0
        %1000 = vmatpush1.msra.mxu0 0.0
        %1001 = vmatprep.subr.mxu0 0.0
        %1002 = vmatpush1.msra.mxu0 0.0
        %1003 = vmatprep.subr.mxu0 0.0
        %1004 = vmatpush1.msra.mxu0 0.0
        %1005 = vmatprep.subr.mxu0 0.0
        %1006 = vmatpush1.msra.mxu0 0.0
        %1007 = vmatprep.subr.mxu0 0.0
        %1008 = vmatpush1.msra.mxu0 0.0
        %1009 = vmatprep.subr.mxu0 0.0
        %1010 = vmatpush1.msra.mxu0 0.0
        %1011 = vmatprep.subr.mxu0 0.0
        %1012 = vmatpush1.msra.mxu0 0.0
        %1013 = vmatprep.subr.mxu0 0.0
        %1014 = vmatpush1.msra.mxu0 0.0
        %1015 = vmatprep.subr.mxu0 0.0
        %1016 = vmatpush1.msra.mxu0 0.0
        %1017 = vmatprep.subr.mxu0 0.0
        %1018 = vmatpush1.msra.mxu0 0.0
        %1019 = vmatprep.subr.mxu0 0.0
        %1020 = vmatpush1.msra.mxu0 0.0
        %1021 = vmatprep.mubr.f32.mxu0 0.0
        %1022 = vmatmul.mubr.f32.gmra.mrb[0].mxu0 %v955
        %v1023 = vpop.f32.mrb[0].mxu0
        %v1024 = vadd.f32 0.0, %v1023
        %v1025 = vpop.f32.mrb[0].mxu0
        %1026 = vdwg.mxu0
        %1028 = vrot.lane.b32.xlu0 %v690, 8
        %v1029 = vpop.permute.xlu0 %1028
        %1032 = vrot.lane.b32.xlu0 %v857, 16
        %v1033 = vpop.permute.xlu0 %1032
        %1036 = vrot.lane.b32.xlu0 %v1024, 24
        %v1037 = vpop.permute.xlu0 %1036
        %v1039 = vsel %vm356, %v523, %v1029
        %vm1040 = vcmask 130048
        %v1041 = vsel %vm1040, %v1039, %v1033
        %vm1042 = vcmask 195584
        %v1043 = vsel %vm1042, %v1041, %v1037
        %1048 = vrot.lane.b32.xlu0 %v237, 32
        %v1049 = vpop.permute.xlu0 %1048
        %1050 = vrot.lane.b32.xlu0 %v239, 32
        %v1051 = vpop.permute.xlu0 %1050
        %1052 = vrot.lane.b32.xlu0 %v241, 32
        %v1053 = vpop.permute.xlu0 %1052
        %1054 = vrot.lane.b32.xlu0 %v243, 32
        %v1055 = vpop.permute.xlu0 %1054
        %v1061 = vsel %vm255, %v1043, 0
        %1063 = vmatprep.subr.mxu0 0.0
        %1064 = vmatpush1.msra.mxu0 %v1049
        %1065 = vmatprep.subr.mxu0 0.0
        %1066 = vmatpush1.msra.mxu0 %v1051
        %1067 = vmatprep.subr.mxu0 0.0
        %1068 = vmatpush1.msra.mxu0 %v1053
        %1069 = vmatprep.subr.mxu0 0.0
        %1070 = vmatpush1.msra.mxu0 %v1055
        %1071 = vmatprep.subr.mxu0 0.0
        %1072 = vmatpush1.msra.mxu0 0.0
        %1073 = vmatprep.subr.mxu0 0.0
        %1074 = vmatpush1.msra.mxu0 0.0
        %1075 = vmatprep.subr.mxu0 0.0
        %1076 = vmatpush1.msra.mxu0 0.0
        %1077 = vmatprep.subr.mxu0 0.0
        %1078 = vmatpush1.msra.mxu0 0.0
        %1079 = vmatprep.subr.mxu0 0.0
        %1080 = vmatpush1.msra.mxu0 0.0
        %1081 = vmatprep.subr.mxu0 0.0
        %1082 = vmatpush1.msra.mxu0 0.0
        %1083 = vmatprep.subr.mxu0 0.0
        %1084 = vmatpush1.msra.mxu0 0.0
        %1085 = vmatprep.subr.mxu0 0.0
        %1086 = vmatpush1.msra.mxu0 0.0
        %1087 = vmatprep.subr.mxu0 0.0
        %1088 = vmatpush1.msra.mxu0 0.0
        %1089 = vmatprep.subr.mxu0 0.0
        %1090 = vmatpush1.msra.mxu0 0.0
        %1091 = vmatprep.subr.mxu0 0.0
        %1092 = vmatpush1.msra.mxu0 0.0
        %1093 = vmatprep.subr.mxu0 0.0
        %1094 = vmatpush1.msra.mxu0 0.0
        %1095 = vmatprep.subr.mxu0 0.0
        %1096 = vmatpush1.msra.mxu0 0.0
        %1097 = vmatprep.subr.mxu0 0.0
        %1098 = vmatpush1.msra.mxu0 0.0
        %1099 = vmatprep.subr.mxu0 0.0
        %1100 = vmatpush1.msra.mxu0 0.0
        %1101 = vmatprep.subr.mxu0 0.0
        %1102 = vmatpush1.msra.mxu0 0.0
        %1103 = vmatprep.subr.mxu0 0.0
        %1104 = vmatpush1.msra.mxu0 0.0
        %1105 = vmatprep.subr.mxu0 0.0
        %1106 = vmatpush1.msra.mxu0 0.0
        %1107 = vmatprep.subr.mxu0 0.0
        %1108 = vmatpush1.msra.mxu0 0.0
        %1109 = vmatprep.subr.mxu0 0.0
        %1110 = vmatpush1.msra.mxu0 0.0
        %1111 = vmatprep.subr.mxu0 0.0
        %1112 = vmatpush1.msra.mxu0 0.0
        %1113 = vmatprep.subr.mxu0 0.0
        %1114 = vmatpush1.msra.mxu0 0.0
        %1115 = vmatprep.subr.mxu0 0.0
        %1116 = vmatpush1.msra.mxu0 0.0
        %1117 = vmatprep.subr.mxu0 0.0
        %1118 = vmatpush1.msra.mxu0 0.0
        %1119 = vmatprep.subr.mxu0 0.0
        %1120 = vmatpush1.msra.mxu0 0.0
        %1121 = vmatprep.subr.mxu0 0.0
        %1122 = vmatpush1.msra.mxu0 0.0
        %1123 = vmatprep.subr.mxu0 0.0
        %1124 = vmatpush1.msra.mxu0 0.0
        %1125 = vmatprep.subr.mxu0 0.0
        %1126 = vmatpush1.msra.mxu0 0.0
        %1127 = vmatprep.mubr.f32.mxu0 0.0
        %1128 = vmatmul.mubr.f32.gmra.mrb[0].mxu0 %v1061
        %v1129 = vpop.f32.mrb[0].mxu0
        %v1130 = vadd.f32 0.0, %v1129
        %v1131 = vpop.f32.mrb[0].mxu0
        %1132 = vdwg.mxu0
        %v1133 = vadd.f32 %v234, %v1130
        %v1134 = vlaneseq
        %v1135 = vshrl.u32 %v1134, 7
        %v1136 = vsub.s32 1, %v1135
        %v1137 = vrot.slane %v236, %v1136
        %v1138 = vadd.f32 %v1133, %v1137
        %v1139 = vsel %vm255, %v1138, 0.0
        %1140 = vadd.xlane.f32.xlu0 %v1139
        %v1141 = vpop.xlane.xlu0 %1140
        %v1142 = vmul.f32 %v1141, %v259
        %v1143 = vsub.f32 %v1138, %v1142
        %v1144 = vmul.f32 %v1143, %v1143
        %v1145 = vsel %vm255, %v1144, 0.0
        %1146 = vadd.xlane.f32.xlu0 %v1145
        %v1147 = vpop.xlane.xlu0 %1146
        %v1148 = vmul.f32 %v1147, %v259
        %v1149 = vadd.f32 %v1148, 1e-12
        %v1150 = vrsqrt.pop %v1149
        %v1151 = vmul.f32 %v1143, %v1150
        %v1152 = vlaneseq
        %v1153 = vshrl.u32 %v1152, 7
        %v1154 = vsub.s32 2, %v1153
        %v1155 = vrot.slane %v236, %v1154
        %v1157 = vsel %vm255, %v1151, 0
        %1159 = vmatprep.subr.mxu0 0.0
        %1160 = vmatpush1.msra.mxu0 %v238
        %1161 = vmatprep.subr.mxu0 0.0
        %1162 = vmatpush1.msra.mxu0 %v240
        %1163 = vmatprep.subr.mxu0 0.0
        %1164 = vmatpush1.msra.mxu0 %v242
        %1165 = vmatprep.subr.mxu0 0.0
        %1166 = vmatpush1.msra.mxu0 %v244
        %1167 = vmatprep.subr.mxu0 0.0
        %1168 = vmatpush1.msra.mxu0 0.0
        %1169 = vmatprep.subr.mxu0 0.0
        %1170 = vmatpush1.msra.mxu0 0.0
        %1171 = vmatprep.subr.mxu0 0.0
        %1172 = vmatpush1.msra.mxu0 0.0
        %1173 = vmatprep.subr.mxu0 0.0
        %1174 = vmatpush1.msra.mxu0 0.0
        %1175 = vmatprep.subr.mxu0 0.0
        %1176 = vmatpush1.msra.mxu0 0.0
        %1177 = vmatprep.subr.mxu0 0.0
        %1178 = vmatpush1.msra.mxu0 0.0
        %1179 = vmatprep.subr.mxu0 0.0
        %1180 = vmatpush1.msra.mxu0 0.0
        %1181 = vmatprep.subr.mxu0 0.0
        %1182 = vmatpush1.msra.mxu0 0.0
        %1183 = vmatprep.subr.mxu0 0.0
        %1184 = vmatpush1.msra.mxu0 0.0
        %1185 = vmatprep.subr.mxu0 0.0
        %1186 = vmatpush1.msra.mxu0 0.0
        %1187 = vmatprep.subr.mxu0 0.0
        %1188 = vmatpush1.msra.mxu0 0.0
        %1189 = vmatprep.subr.mxu0 0.0
        %1190 = vmatpush1.msra.mxu0 0.0
        %1191 = vmatprep.subr.mxu0 0.0
        %1192 = vmatpush1.msra.mxu0 0.0
        %1193 = vmatprep.subr.mxu0 0.0
        %1194 = vmatpush1.msra.mxu0 0.0
        %1195 = vmatprep.subr.mxu0 0.0
        %1196 = vmatpush1.msra.mxu0 0.0
        %1197 = vmatprep.subr.mxu0 0.0
        %1198 = vmatpush1.msra.mxu0 0.0
        %1199 = vmatprep.subr.mxu0 0.0
        %1200 = vmatpush1.msra.mxu0 0.0
        %1201 = vmatprep.subr.mxu0 0.0
        %1202 = vmatpush1.msra.mxu0 0.0
        %1203 = vmatprep.subr.mxu0 0.0
        %1204 = vmatpush1.msra.mxu0 0.0
        %1205 = vmatprep.subr.mxu0 0.0
        %1206 = vmatpush1.msra.mxu0 0.0
        %1207 = vmatprep.subr.mxu0 0.0
        %1208 = vmatpush1.msra.mxu0 0.0
        %1209 = vmatprep.subr.mxu0 0.0
        %1210 = vmatpush1.msra.mxu0 0.0
        %1211 = vmatprep.subr.mxu0 0.0
        %1212 = vmatpush1.msra.mxu0 0.0
        %1213 = vmatprep.subr.mxu0 0.0
        %1214 = vmatpush1.msra.mxu0 0.0
        %1215 = vmatprep.subr.mxu0 0.0
        %1216 = vmatpush1.msra.mxu0 0.0
        %1217 = vmatprep.subr.mxu0 0.0
        %1218 = vmatpush1.msra.mxu0 0.0
        %1219 = vmatprep.subr.mxu0 0.0
        %1220 = vmatpush1.msra.mxu0 0.0
        %1221 = vmatprep.subr.mxu0 0.0
        %1222 = vmatpush1.msra.mxu0 0.0
        %1223 = vmatprep.mubr.f32.mxu0 0.0
        %1224 = vmatmul.mubr.f32.gmra.mrb[0].mxu0 %v1157
        %v1225 = vpop.f32.mrb[0].mxu0
        %v1226 = vadd.f32 %v1155, %v1225
        %v1227 = vpop.f32.mrb[0].mxu0
        %1228 = vdwg.mxu0
        %v1229 = vmax.f32 %v1226, 0.0
        %v1230 = vlaneseq
        %v1231 = vshrl.u32 %v1230, 7
        %v1232 = vsub.s32 3, %v1231
        %v1233 = vrot.slane %v236, %v1232
        %vm1234 = vcmask 523264
        %v1236 = vsel %vm1234, %v1229, 0
        %1238 = vmatprep.subr.mxu0 0.0
        %1239 = vmatpush1.msra.mxu0 %v245
        %1240 = vmatprep.subr.mxu0 0.0
        %1241 = vmatpush1.msra.mxu0 %v246
        %1242 = vmatprep.subr.mxu0 0.0
        %1243 = vmatpush1.msra.mxu0 %v247
        %1244 = vmatprep.subr.mxu0 0.0
        %1245 = vmatpush1.msra.mxu0 %v248
        %1246 = vmatprep.subr.mxu0 0.0
        %1247 = vmatpush1.msra.mxu0 %v249
        %1248 = vmatprep.subr.mxu0 0.0
        %1249 = vmatpush1.msra.mxu0 %v250
        %1250 = vmatprep.subr.mxu0 0.0
        %1251 = vmatpush1.msra.mxu0 %v251
        %1252 = vmatprep.subr.mxu0 0.0
        %1253 = vmatpush1.msra.mxu0 %v252
        %1254 = vmatprep.subr.mxu0 0.0
        %1255 = vmatpush1.msra.mxu0 0.0
        %1256 = vmatprep.subr.mxu0 0.0
        %1257 = vmatpush1.msra.mxu0 0.0
        %1258 = vmatprep.subr.mxu0 0.0
        %1259 = vmatpush1.msra.mxu0 0.0
        %1260 = vmatprep.subr.mxu0 0.0
        %1261 = vmatpush1.msra.mxu0 0.0
        %1262 = vmatprep.subr.mxu0 0.0
        %1263 = vmatpush1.msra.mxu0 0.0
        %1264 = vmatprep.subr.mxu0 0.0
        %1265 = vmatpush1.msra.mxu0 0.0
        %1266 = vmatprep.subr.mxu0 0.0
        %1267 = vmatpush1.msra.mxu0 0.0
        %1268 = vmatprep.subr.mxu0 0.0
        %1269 = vmatpush1.msra.mxu0 0.0
        %1270 = vmatprep.subr.mxu0 0.0
        %1271 = vmatpush1.msra.mxu0 0.0
        %1272 = vmatprep.subr.mxu0 0.0
        %1273 = vmatpush1.msra.mxu0 0.0
        %1274 = vmatprep.subr.mxu0 0.0
        %1275 = vmatpush1.msra.mxu0 0.0
        %1276 = vmatprep.subr.mxu0 0.0
        %1277 = vmatpush1.msra.mxu0 0.0
        %1278 = vmatprep.subr.mxu0 0.0
        %1279 = vmatpush1.msra.mxu0 0.0
        %1280 = vmatprep.subr.mxu0 0.0
        %1281 = vmatpush1.msra.mxu0 0.0
        %1282 = vmatprep.subr.mxu0 0.0
        %1283 = vmatpush1.msra.mxu0 0.0
        %1284 = vmatprep.subr.mxu0 0.0
        %1285 = vmatpush1.msra.mxu0 0.0
        %1286 = vmatprep.subr.mxu0 0.0
        %1287 = vmatpush1.msra.mxu0 0.0
        %1288 = vmatprep.subr.mxu0 0.0
        %1289 = vmatpush1.msra.mxu0 0.0
        %1290 = vmatprep.subr.mxu0 0.0
        %1291 = vmatpush1.msra.mxu0 0.0
        %1292 = vmatprep.subr.mxu0 0.0
        %1293 = vmatpush1.msra.mxu0 0.0
        %1294 = vmatprep.subr.mxu0 0.0
        %1295 = vmatpush1.msra.mxu0 0.0
        %1296 = vmatprep.subr.mxu0 0.0
        %1297 = vmatpush1.msra.mxu0 0.0
        %1298 = vmatprep.subr.mxu0 0.0
        %1299 = vmatpush1.msra.mxu0 0.0
        %1300 = vmatprep.subr.mxu0 0.0
        %1301 = vmatpush1.msra.mxu0 0.0
        %1302 = vmatprep.mubr.f32.mxu0 0.0
        %1303 = vmatmul.mubr.f32.gmra.mrb[0].mxu0 %v1236
        %v1304 = vpop.f32.mrb[0].mxu0
        %v1305 = vadd.f32 %v1233, %v1304
        %v1306 = vpop.f32.mrb[0].mxu0
        %1307 = vdwg.mxu0
        %v1308 = vadd.f32 %v1138, %v1305
        %1309 = vst.msk [vmem:[%s226] sm:$0xff] %vm255, %v1308
        %s1310 = sand.u32 %s142, 1
        %s1311 = scalar_lea.sflag [#allocation3], %s1310
        %s1312 = sand.u32 %s142, 1
        %s1313 = smul.addr %s1312, 8
        %s1314 = scalar_lea.vmem [#allocation2], %s1313
        // Predicated region
        $region41: #{tpu_custom_call.1} parent=39 // pred_check
          %p1315 = pneg %p152
        $region42: #{tpu_custom_call.1} parent=39 // pred_check_branch
          %1317 = sbr.rel (%p1315) target = $region44
        $region43: #{tpu_custom_call.1} parent=39 // pred_region
          %s1319 = ssub.s32 128, 128
          %1320 = vsyncadd %s1311, %s1319
          %s1321 = smul.addr %s19, 128
          %s1322 = scalar_lea.hbm %s5, %s1321
          %s1324 = sshll.u32 %s1314, 4
          %s1325 = int_to_ptr.vmem [resolvable:$true] %s1324
          %1327 = dma.vmem_to_hbm [thread:$0]  %s1325, 128, %s1322, %s1311
        $region44: #{tpu_custom_call.1} parent=39 // pred_fallthru
          _
      $region40: #{tpu_custom_call.1} parent=5 // pred_fallthru
        _
      %p1328 = scmp.le.s32.totalorder 2, %s14
      // Predicated region
      $region45: #{tpu_custom_call.1} parent=5 // pred_check
        %p1329 = pneg %p1328
      $region46: #{tpu_custom_call.1} parent=5 // pred_check_branch
        %1331 = sbr.rel (%p1329) target = $region48
      $region47: #{tpu_custom_call.1} parent=5 // pred_region
        %s1332 = ssub.s32 %s14, 2
        // Predicated region
        $region49: #{tpu_custom_call.1} parent=47 // pred_check
          %p1333 = pneg %p158
        $region50: #{tpu_custom_call.1} parent=47 // pred_check_branch
          %1335 = sbr.rel (%p1333) target = $region52
        $region51: #{tpu_custom_call.1} parent=47 // pred_region
          %s1336 = sand.u32 %s143, 1
          %s1337 = scalar_lea.sflag [#allocation3], %s1336
          %s1338 = sand.u32 %s143, 1
          %s1339 = smul.addr %s1338, 8
          %s1340 = scalar_lea.vmem [#allocation2], %s1339
          %1341 = dma.done %s1337, 128
        $region52: #{tpu_custom_call.1} parent=47 // pred_fallthru
          _
      $region48: #{tpu_custom_call.1} parent=5 // pred_fallthru
        _
    $region6: #{tpu_custom_call.1} parent=1 // loop_footer
      %s18 = sadd.s32 1, %s14
    $region7: #{tpu_custom_call.1} parent=1 // loop_footer_branch
      %13 = sbr.rel target = $region3
    $region8: #{tpu_custom_call.1} parent=1 // loop_exit
      _
    %1342 = vsyncpa [#allocation3], 1
    %s1343 = scalar_lea.sflag [#allocation3], 1
    %1344 = vsyncpa %s1343, 1

</llo_original>
